<compile_context>
chip_gen: v6e
topology: v6e:2x2x1
jax: 0.10.0
libtpu: 0.0.40
codegen_flags: <defaults>
</compile_context>

<pallas_src>
import jax
import jax.numpy as jnp
from jax.experimental import pallas as pl
from jax.experimental.pallas import tpu as pltpu

CLINICAL_NUMBER = 20
CLI_PAD = 32           # clinical K padded 20 -> 32 (clean sublane tiles)
Z_DIM = 1024
HIDDEN = 512
OUT_DIM = 2
OUT_PAD = 128          # lane-dense output width; real output is [:, :2]


def _round_up(x, m):
    return -(-x // m) * m


def mlp_kernel(z_ref, cli_ref, w1z_ref, w1c_ref, b1_ref, w2_ref, b2_ref, o_ref):
    # Cast activations to bf16 in-kernel (MXU-native); accumulate in f32.
    z_b = z_ref[...].astype(jnp.bfloat16)
    cli_b = cli_ref[...].astype(jnp.bfloat16)
    h = (jnp.dot(z_b, w1z_ref[...], preferred_element_type=jnp.float32)
         + jnp.dot(cli_b, w1c_ref[...], preferred_element_type=jnp.float32)
         + b1_ref[...])
    h = jnp.maximum(h, 0.0)
    # Second linear into a lane-dense 128-wide zero-padded head.
    # TODO(synk): on v5e (MXU-bound) the 2 real columns could be done as two
    # VPU-mul + XLU-reduce instead of a 128-wide padded MXU matmul.
    out = jnp.dot(h.astype(w2_ref.dtype), w2_ref[...],
                  preferred_element_type=jnp.float32) + b2_ref[...]
    o_ref[...] = out.astype(o_ref.dtype)


def net_forward(z, cli, params, tile_b=512):
    """z: (B, 1024) f32, cli: (B, 20) f32 -> (B, 2) f32."""
    w1z, w1c, b1, w2, b2 = params
    B = z.shape[0]

    # Batch tile: 16-sublane aligned (bf16 packing); large default so each grid
    # step is well past the ~0.35us fixed step cost and the z DMA pipelines.
    tb = min(tile_b, _round_up(B, 16))
    nb = -(-B // tb)
    Bp = nb * tb

    # Only pad the batch when it doesn't divide evenly; z stays f32 (cast
    # happens inside the kernel — no extra HBM traversal of the big activation).
    z_p = z if Bp == B else jnp.pad(z, ((0, Bp - B), (0, 0)))
    # cli is tiny (20 cols) — pad columns to 32 (and rows to Bp) once.
    cli_p = jnp.zeros((Bp, CLI_PAD), cli.dtype).at[:B, :CLINICAL_NUMBER].set(cli)

    flops = 2 * Bp * (Z_DIM + CLI_PAD) * HIDDEN + 2 * Bp * HIDDEN * OUT_PAD
    bytes_accessed = (
        z_p.size * 4 + cli_p.size * 4                 # streamed activations (f32)
        + w1z.size * 2 + w1c.size * 2 + w2.size * 2   # resident bf16 weights (once)
        + b1.size * 4 + b2.size * 4                   # resident f32 biases (once)
        + Bp * OUT_PAD * 2)                           # bf16 padded writeback

    out = pl.pallas_call(
        mlp_kernel,
        out_shape=jax.ShapeDtypeStruct((Bp, OUT_PAD), jnp.bfloat16),
        grid_spec=pltpu.PrefetchScalarGridSpec(
            num_scalar_prefetch=0,
            grid=(nb,),
            in_specs=[
                pl.BlockSpec((tb, Z_DIM), lambda i: (i, 0)),       # z (streamed)
                pl.BlockSpec((tb, CLI_PAD), lambda i: (i, 0)),     # cli (streamed)
                pl.BlockSpec((Z_DIM, HIDDEN), lambda i: (0, 0)),   # W1z (resident)
                pl.BlockSpec((CLI_PAD, HIDDEN), lambda i: (0, 0)), # W1c (resident)
                pl.BlockSpec((1, HIDDEN), lambda i: (0, 0)),       # b1  (resident)
                pl.BlockSpec((HIDDEN, OUT_PAD), lambda i: (0, 0)), # W2  (resident)
                pl.BlockSpec((1, OUT_PAD), lambda i: (0, 0)),      # b2  (resident)
            ],
            out_specs=pl.BlockSpec((tb, OUT_PAD), lambda i: (i, 0)),
        ),
        compiler_params=pltpu.CompilerParams(
            dimension_semantics=("parallel",),
            vmem_limit_bytes=32 * 1024 * 1024,
        ),
        cost_estimate=pl.CostEstimate(flops=flops, transcendentals=0,
                                      bytes_accessed=bytes_accessed),
    )(z_p, cli_p, w1z, w1c, b1, w2, b2)

    return out[:B, :OUT_DIM].astype(jnp.float32)


def init_params(key):
    """Deterministic init mimicking nn.Linear (uniform +/- 1/sqrt(fan_in))."""
    k1, k2, k3, k4 = jax.random.split(key, 4)
    fan_in1 = Z_DIM + CLINICAL_NUMBER
    bound1 = 1.0 / jnp.sqrt(jnp.float32(fan_in1))
    # W1 stored pre-transposed as (in, out) so the kernel does x @ W.
    w1 = jax.random.uniform(k1, (fan_in1, HIDDEN), jnp.float32, -bound1, bound1)
    b1 = jax.random.uniform(k2, (1, HIDDEN), jnp.float32, -bound1, bound1)
    bound2 = 1.0 / jnp.sqrt(jnp.float32(HIDDEN))
    w2 = jax.random.uniform(k3, (HIDDEN, OUT_DIM), jnp.float32, -bound2, bound2)
    b2 = jax.random.uniform(k4, (1, OUT_DIM), jnp.float32, -bound2, bound2)

    # Split W1 rows to implement the concat as a split matmul; cast to bf16.
    w1z = w1[:Z_DIM].astype(jnp.bfloat16)                               # (1024, 512)
    w1c = jnp.zeros((CLI_PAD, HIDDEN), jnp.bfloat16).at[:CLINICAL_NUMBER].set(
        w1[Z_DIM:].astype(jnp.bfloat16))                                # (32, 512)
    # Zero-pad the 2-wide output layer to a lane-dense 128-wide slab.
    w2p = jnp.zeros((HIDDEN, OUT_PAD), jnp.bfloat16).at[:, :OUT_DIM].set(
        w2.astype(jnp.bfloat16))                                        # (512, 128)
    b2p = jnp.zeros((1, OUT_PAD), jnp.float32).at[:, :OUT_DIM].set(b2)  # (1, 128)
    return w1z, w1c, b1, w2p, b2p


if __name__ == "__main__":
    key = jax.random.PRNGKey(0)
    kz, kc, kp = jax.random.split(key, 3)

    B = 8
    z = jax.random.normal(kz, (B, Z_DIM), jnp.float32)
    cli = jax.random.normal(kc, (B, CLINICAL_NUMBER), jnp.float32)
    params = init_params(kp)

    out = net_forward(z, cli, params)
    jax.block_until_ready(out)

    # Pure-JAX reference of the same (bf16-weight, f32-accumulate) math.
    w1z, w1c, b1, w2p, b2p = params
    z_b = z.astype(jnp.bfloat16)
    cli_b = jnp.zeros((B, CLI_PAD), jnp.bfloat16).at[:, :CLINICAL_NUMBER].set(
        cli.astype(jnp.bfloat16))
    h = (jnp.dot(z_b, w1z, preferred_element_type=jnp.float32)
         + jnp.dot(cli_b, w1c, preferred_element_type=jnp.float32) + b1)
    h = jnp.maximum(h, 0.0)
    ref = (jnp.dot(h.astype(jnp.bfloat16), w2p,
                   preferred_element_type=jnp.float32) + b2p)[:, :OUT_DIM]

    assert out.shape == (B, OUT_DIM)
    assert jnp.allclose(out, ref, atol=2e-2, rtol=2e-2)

    print("KERNEL_OK")
</pallas_src>

<mosaic_0001>
module attributes {stable_mosaic.version = 11 : i64} {
  func.func @mlp_kernel(%arg0: i32, %arg1: memref<16x1024xf32, #tpu.memory_space<vmem>>, %arg2: memref<16x32xf32, #tpu.memory_space<vmem>>, %arg3: memref<1024x512xbf16, #tpu.memory_space<vmem>>, %arg4: memref<32x512xbf16, #tpu.memory_space<vmem>>, %arg5: memref<1x512xf32, #tpu.memory_space<vmem>>, %arg6: memref<512x128xbf16, #tpu.memory_space<vmem>>, %arg7: memref<1x128xf32, #tpu.memory_space<vmem>>, %arg8: memref<16x128xbf16, #tpu.memory_space<vmem>>) attributes {dimension_semantics = [#tpu.dimension_semantics<parallel>], iteration_bounds = array<i64: 1>, scalar_prefetch = 0 : i64, scratch_operands = 0 : i64, tpu.core_type = #tpu.core_type<tc>, window_params = [{transform_indices = @transform_0, window_bounds = array<i64: 16, 1024>}, {transform_indices = @transform_1, window_bounds = array<i64: 16, 32>}, {pipeline_mode = #tpu.pipeline_mode<synchronous>, transform_indices = @transform_2, window_bounds = array<i64: 1024, 512>}, {pipeline_mode = #tpu.pipeline_mode<synchronous>, transform_indices = @transform_3, window_bounds = array<i64: 32, 512>}, {pipeline_mode = #tpu.pipeline_mode<synchronous>, transform_indices = @transform_4, window_bounds = array<i64: 1, 512>}, {pipeline_mode = #tpu.pipeline_mode<synchronous>, transform_indices = @transform_5, window_bounds = array<i64: 512, 128>}, {pipeline_mode = #tpu.pipeline_mode<synchronous>, transform_indices = @transform_6, window_bounds = array<i64: 1, 128>}, {transform_indices = @transform_7, window_bounds = array<i64: 16, 128>}]} {
    %c0 = arith.constant 0 : index
    %c0_0 = arith.constant 0 : index
    %0 = vector.load %arg1[%c0, %c0_0] : memref<16x1024xf32, #tpu.memory_space<vmem>>, vector<16x1024xf32>
    %1 = arith.truncf %0 : vector<16x1024xf32> to vector<16x1024xbf16>
    %c0_1 = arith.constant 0 : index
    %c0_2 = arith.constant 0 : index
    %2 = vector.load %arg2[%c0_1, %c0_2] : memref<16x32xf32, #tpu.memory_space<vmem>>, vector<16x32xf32>
    %3 = arith.truncf %2 : vector<16x32xf32> to vector<16x32xbf16>
    %c0_3 = arith.constant 0 : index
    %c0_4 = arith.constant 0 : index
    %4 = vector.load %arg3[%c0_3, %c0_4] : memref<1024x512xbf16, #tpu.memory_space<vmem>>, vector<1024x512xbf16>
    %cst = arith.constant dense<0.000000e+00> : vector<16x512xf32>
    %5 = tpu.matmul %1, %4, %cst {dimension_numbers = #tpu.dot_dimension_numbers<[1], [0], [0], [1], [0, 0, 1, 1], [], []>} : vector<16x1024xbf16>, vector<1024x512xbf16>, vector<16x512xf32> -> vector<16x512xf32>
    %c0_5 = arith.constant 0 : index
    %c0_6 = arith.constant 0 : index
    %6 = vector.load %arg4[%c0_5, %c0_6] : memref<32x512xbf16, #tpu.memory_space<vmem>>, vector<32x512xbf16>
    %cst_7 = arith.constant dense<0.000000e+00> : vector<16x512xf32>
    %7 = tpu.matmul %3, %6, %cst_7 {dimension_numbers = #tpu.dot_dimension_numbers<[1], [0], [0], [1], [0, 0, 1, 1], [], []>} : vector<16x32xbf16>, vector<32x512xbf16>, vector<16x512xf32> -> vector<16x512xf32>
    %8 = arith.addf %5, %7 : vector<16x512xf32>
    %c0_8 = arith.constant 0 : index
    %c0_9 = arith.constant 0 : index
    %9 = vector.load %arg5[%c0_8, %c0_9] : memref<1x512xf32, #tpu.memory_space<vmem>>, vector<1x512xf32>
    %10 = vector.broadcast %9 : vector<1x512xf32> to vector<16x512xf32>
    %11 = arith.addf %8, %10 : vector<16x512xf32>
    %cst_10 = arith.constant 0.000000e+00 : f32
    %12 = vector.broadcast %cst_10 : f32 to vector<16x512xf32>
    %13 = arith.maximumf %11, %12 : vector<16x512xf32>
    %14 = arith.truncf %13 : vector<16x512xf32> to vector<16x512xbf16>
    %c0_11 = arith.constant 0 : index
    %c0_12 = arith.constant 0 : index
    %15 = vector.load %arg6[%c0_11, %c0_12] : memref<512x128xbf16, #tpu.memory_space<vmem>>, vector<512x128xbf16>
    %cst_13 = arith.constant dense<0.000000e+00> : vector<16x128xf32>
    %16 = tpu.matmul %14, %15, %cst_13 {dimension_numbers = #tpu.dot_dimension_numbers<[1], [0], [0], [1], [0, 0, 1, 1], [], []>} : vector<16x512xbf16>, vector<512x128xbf16>, vector<16x128xf32> -> vector<16x128xf32>
    %c0_14 = arith.constant 0 : index
    %c0_15 = arith.constant 0 : index
    %17 = vector.load %arg7[%c0_14, %c0_15] : memref<1x128xf32, #tpu.memory_space<vmem>>, vector<1x128xf32>
    %18 = vector.broadcast %17 : vector<1x128xf32> to vector<16x128xf32>
    %19 = arith.addf %16, %18 : vector<16x128xf32>
    %20 = arith.truncf %19 : vector<16x128xf32> to vector<16x128xbf16>
    %c0_16 = arith.constant 0 : index
    %c0_17 = arith.constant 0 : index
    %21 = vector.load %arg8[%c0_16, %c0_17] : memref<16x128xbf16, #tpu.memory_space<vmem>>, vector<16x128xbf16>
    tpu.vector_store %arg8[%c0_16, %c0_17], %20 {strides = array<i32>} : memref<16x128xbf16, #tpu.memory_space<vmem>>, vector<16x128xbf16>,
    return
  }
  func.func @transform_0(%arg0: i32) -> (i32, i32) {
    %c0_i32 = arith.constant 0 : i32
    %c0_i32_0 = arith.constant 0 : i32
    return %arg0, %c0_i32 : i32, i32
  }
  func.func @transform_1(%arg0: i32) -> (i32, i32) {
    %c0_i32 = arith.constant 0 : i32
    %c0_i32_0 = arith.constant 0 : i32
    return %arg0, %c0_i32 : i32, i32
  }
  func.func @transform_2(%arg0: i32) -> (i32, i32) {
    %c0_i32 = arith.constant 0 : i32
    %c0_i32_0 = arith.constant 0 : i32
    %c0_i32_1 = arith.constant 0 : i32
    return %c0_i32, %c0_i32_0 : i32, i32
  }
  func.func @transform_3(%arg0: i32) -> (i32, i32) {
    %c0_i32 = arith.constant 0 : i32
    %c0_i32_0 = arith.constant 0 : i32
    %c0_i32_1 = arith.constant 0 : i32
    return %c0_i32, %c0_i32_0 : i32, i32
  }
  func.func @transform_4(%arg0: i32) -> (i32, i32) {
    %c0_i32 = arith.constant 0 : i32
    %c0_i32_0 = arith.constant 0 : i32
    %c0_i32_1 = arith.constant 0 : i32
    return %c0_i32, %c0_i32_0 : i32, i32
  }
  func.func @transform_5(%arg0: i32) -> (i32, i32) {
    %c0_i32 = arith.constant 0 : i32
    %c0_i32_0 = arith.constant 0 : i32
    %c0_i32_1 = arith.constant 0 : i32
    return %c0_i32, %c0_i32_0 : i32, i32
  }
  func.func @transform_6(%arg0: i32) -> (i32, i32) {
    %c0_i32 = arith.constant 0 : i32
    %c0_i32_0 = arith.constant 0 : i32
    %c0_i32_1 = arith.constant 0 : i32
    return %c0_i32, %c0_i32_0 : i32, i32
  }
  func.func @transform_7(%arg0: i32) -> (i32, i32) {
    %c0_i32 = arith.constant 0 : i32
    %c0_i32_0 = arith.constant 0 : i32
    return %arg0, %c0_i32 : i32, i32
  }
}

</mosaic_0001>

<llo_original>
// kernel: tpu_custom_call.1
$region0: #{tpu_custom_call.1}
  #allocation0 [shape = 'u32[]', space=smem, size = 0x4, offset = 0x4, fixed_abs, tag = 'smem constant byte address 0x4 - core index']
  #allocation1 [shape = 'u32[144,128]{1,0:T(1,128)}', space=vmem, size = 0x12000, scoped, tag = 'internal scratch']
  %s0 = inlined_call_operand.hbm [shape: f32[16,1024], index: 0, kind: input, shape index: {}]
  %s1 = inlined_call_operand.hbm [shape: f32[16,32], index: 1, kind: input, shape index: {}]
  %s2 = inlined_call_operand.hbm [shape: bf16[1024,512], index: 2, kind: input, shape index: {}]
  %s3 = inlined_call_operand.hbm [shape: bf16[32,512], index: 3, kind: input, shape index: {}]
  %s4 = inlined_call_operand.vmem [shape: f32[1,512], index: 4, kind: input, shape index: {}]
  %s5 = inlined_call_operand.hbm [shape: bf16[512,128], index: 5, kind: input, shape index: {}]
  %s6 = inlined_call_operand.vmem [shape: f32[1,128], index: 6, kind: input, shape index: {}]
  %s7 = inlined_call_operand.hbm [shape: bf16[16,128], index: 7, kind: output, shape index: {}]
  %s8 = sld [smem:[#allocation0]]
  $region58: #{tpu_custom_call.1} parent=0
    _
  %s10 = ssub.s32 1, %s8
  %s11 = scalar_select 0, %s10, %s8
  $region1: #{tpu_custom_call.1} parent=0
    #allocation2 [shape = 'u8[65536]{0}', space=vmem, size = 0x10000, scoped, tag = 'input window, operand 0, single buffered']
    #allocation3 [shape = 's32[1]{0}', space=sflag, size = 0x4, scoped, tag = 'scoped memory for tpu_custom_call.1']
    #allocation4 [shape = 's32[1]{0}', space=sflag, size = 0x4, scoped, tag = 'scoped memory for tpu_custom_call.1']
    #allocation5 [shape = 'u8[8192]{0}', space=vmem, size = 0x2000, scoped, tag = 'input window, operand 1, single buffered']
    #allocation6 [shape = 's32[1]{0}', space=sflag, size = 0x4, scoped, tag = 'scoped memory for tpu_custom_call.1']
    #allocation7 [shape = 'u8[1048576]{0}', space=vmem, size = 0x100000, scoped, tag = 'input window, operand 2, single buffered']
    #allocation8 [shape = 'u8[32768]{0}', space=vmem, size = 0x8000, scoped, tag = 'input window, operand 3, single buffered']
    #allocation9 [shape = 's32[1]{0}', space=sflag, size = 0x4, scoped, tag = 'scoped memory for tpu_custom_call.1']
    #allocation10 [shape = 'u8[131072]{0}', space=vmem, size = 0x20000, scoped, tag = 'input window, operand 5, single buffered']
    #allocation11 [shape = 'u8[4096]{0}', space=vmem, size = 0x1000, scoped, tag = 'output window, operand 0, single buffered']
    %12 = vsyncpa [#allocation3], 0
    %13 = vsyncpa [#allocation6], 0
    %14 = vsyncpa [#allocation9], 0
    %15 = vsyncpa [#allocation4], 0
    // Predicated region
    $region2: #{tpu_custom_call.1} parent=1 // pred_check
      _
    $region3: #{tpu_custom_call.1} parent=1 // pred_check_branch
      %17 = sbr.rel (0) target = $region5
    $region4: #{tpu_custom_call.1} parent=1 // pred_region
      %s19 = ssub.s32 2048, 2048
      %20 = vsyncadd [#allocation3], %s19
      %s21 = sshll.u32 [#allocation2], 4
      %s22 = int_to_ptr.vmem [resolvable:$true] %s21
      %27 = dma.hbm_to_vmem [thread:$0]  %s0, 2048, %s22, [#allocation3], 1024, 1024, 64
    $region5: #{tpu_custom_call.1} parent=1 // pred_fallthru
      _
    // Predicated region
    $region6: #{tpu_custom_call.1} parent=1 // pred_check
      _
    $region7: #{tpu_custom_call.1} parent=1 // pred_check_branch
      %29 = sbr.rel (0) target = $region9
    $region8: #{tpu_custom_call.1} parent=1 // pred_region
      %s31 = ssub.s32 256, 256
      %32 = vsyncadd [#allocation6], %s31
      %s33 = sshll.u32 [#allocation5], 4
      %s34 = int_to_ptr.vmem [resolvable:$true] %s33
      %39 = dma.hbm_to_vmem [thread:$0]  %s1, 256, %s34, [#allocation6], 128, 128, 8
    $region9: #{tpu_custom_call.1} parent=1 // pred_fallthru
      _
    // Predicated region
    $region10: #{tpu_custom_call.1} parent=1 // pred_check
      _
    $region11: #{tpu_custom_call.1} parent=1 // pred_check_branch
      %41 = sbr.rel (0) target = $region13
    $region12: #{tpu_custom_call.1} parent=1 // pred_region
      %s43 = ssub.s32 32768, 32768
      %44 = vsyncadd [#allocation6], %s43
      %s45 = sshll.u32 [#allocation7], 4
      %s46 = int_to_ptr.vmem [resolvable:$true] %s45
      %51 = dma.hbm_to_vmem [thread:$0]  %s2, 32768, %s46, [#allocation6], 256, 256, 16
    $region13: #{tpu_custom_call.1} parent=1 // pred_fallthru
      _
    // Predicated region
    $region14: #{tpu_custom_call.1} parent=1 // pred_check
      _
    $region15: #{tpu_custom_call.1} parent=1 // pred_check_branch
      %53 = sbr.rel (0) target = $region17
    $region16: #{tpu_custom_call.1} parent=1 // pred_region
      %s55 = ssub.s32 1024, 1024
      %56 = vsyncadd [#allocation9], %s55
      %s57 = sshll.u32 [#allocation8], 4
      %s58 = int_to_ptr.vmem [resolvable:$true] %s57
      %63 = dma.hbm_to_vmem [thread:$0]  %s3, 1024, %s58, [#allocation9], 256, 256, 16
    $region17: #{tpu_custom_call.1} parent=1 // pred_fallthru
      _
    // Predicated region
    $region18: #{tpu_custom_call.1} parent=1 // pred_check
      _
    $region19: #{tpu_custom_call.1} parent=1 // pred_check_branch
      %65 = sbr.rel (0) target = $region21
    $region20: #{tpu_custom_call.1} parent=1 // pred_region
      _
    $region21: #{tpu_custom_call.1} parent=1 // pred_fallthru
      _
    // Predicated region
    $region22: #{tpu_custom_call.1} parent=1 // pred_check
      _
    $region23: #{tpu_custom_call.1} parent=1 // pred_check_branch
      %67 = sbr.rel (0) target = $region25
    $region24: #{tpu_custom_call.1} parent=1 // pred_region
      %s69 = ssub.s32 4096, 4096
      %70 = vsyncadd [#allocation9], %s69
      %s71 = sshll.u32 [#allocation10], 4
      %s72 = int_to_ptr.vmem [resolvable:$true] %s71
      %77 = dma.hbm_to_vmem [thread:$0]  %s5, 4096, %s72, [#allocation9], 64, 64, 4
    $region25: #{tpu_custom_call.1} parent=1 // pred_fallthru
      _
    // Predicated region
    $region26: #{tpu_custom_call.1} parent=1 // pred_check
      _
    $region27: #{tpu_custom_call.1} parent=1 // pred_check_branch
      %79 = sbr.rel (0) target = $region29
    $region28: #{tpu_custom_call.1} parent=1 // pred_region
      _
    $region29: #{tpu_custom_call.1} parent=1 // pred_fallthru
      _
    // Predicated region
    $region30: #{tpu_custom_call.1} parent=1 // pred_check
      _
    $region31: #{tpu_custom_call.1} parent=1 // pred_check_branch
      %81 = sbr.rel (0) target = $region33
    $region32: #{tpu_custom_call.1} parent=1 // pred_region
      %82 = dma.done [#allocation3], 2048
    $region33: #{tpu_custom_call.1} parent=1 // pred_fallthru
      _
    // Predicated region
    $region34: #{tpu_custom_call.1} parent=1 // pred_check
      _
    $region35: #{tpu_custom_call.1} parent=1 // pred_check_branch
      %84 = sbr.rel (0) target = $region37
    $region36: #{tpu_custom_call.1} parent=1 // pred_region
      %85 = dma.done [#allocation6], 256
    $region37: #{tpu_custom_call.1} parent=1 // pred_fallthru
      _
    // Predicated region
    $region38: #{tpu_custom_call.1} parent=1 // pred_check
      _
    $region39: #{tpu_custom_call.1} parent=1 // pred_check_branch
      %87 = sbr.rel (0) target = $region41
    $region40: #{tpu_custom_call.1} parent=1 // pred_region
      %88 = dma.done [#allocation6], 32768
    $region41: #{tpu_custom_call.1} parent=1 // pred_fallthru
      _
    // Predicated region
    $region42: #{tpu_custom_call.1} parent=1 // pred_check
      _
    $region43: #{tpu_custom_call.1} parent=1 // pred_check_branch
      %90 = sbr.rel (0) target = $region45
    $region44: #{tpu_custom_call.1} parent=1 // pred_region
      %91 = dma.done [#allocation9], 1024
    $region45: #{tpu_custom_call.1} parent=1 // pred_fallthru
      _
    // Predicated region
    $region46: #{tpu_custom_call.1} parent=1 // pred_check
      _
    $region47: #{tpu_custom_call.1} parent=1 // pred_check_branch
      %93 = sbr.rel (0) target = $region49
    $region48: #{tpu_custom_call.1} parent=1 // pred_region
      %94 = dma.done [#allocation9], 4096
    $region49: #{tpu_custom_call.1} parent=1 // pred_fallthru
      _
    %v96 = vld [vmem:[#allocation2] sm:$0xff]
    %v97 = vld [vmem:[#allocation2 + $0x8] sm:$0xff]
    %v98 = vld [vmem:[#allocation2 + $0x10] sm:$0xff]
    %v99 = vld [vmem:[#allocation2 + $0x18] sm:$0xff]
    %v100 = vld [vmem:[#allocation2 + $0x20] sm:$0xff]
    %v101 = vld [vmem:[#allocation2 + $0x28] sm:$0xff]
    %v102 = vld [vmem:[#allocation2 + $0x30] sm:$0xff]
    %v103 = vld [vmem:[#allocation2 + $0x38] sm:$0xff]
    %v104 = vld [vmem:[#allocation2 + $0x40] sm:$0xff]
    %v105 = vld [vmem:[#allocation2 + $0x48] sm:$0xff]
    %v106 = vld [vmem:[#allocation2 + $0x50] sm:$0xff]
    %v107 = vld [vmem:[#allocation2 + $0x58] sm:$0xff]
    %v108 = vld [vmem:[#allocation2 + $0x60] sm:$0xff]
    %v109 = vld [vmem:[#allocation2 + $0x68] sm:$0xff]
    %v110 = vld [vmem:[#allocation2 + $0x70] sm:$0xff]
    %v111 = vld [vmem:[#allocation2 + $0x78] sm:$0xff]
    %v112 = vpack.c.bf16 %v104, %v96
    %v113 = vpack.c.bf16 %v105, %v97
    %v114 = vpack.c.bf16 %v106, %v98
    %v115 = vpack.c.bf16 %v107, %v99
    %v116 = vpack.c.bf16 %v108, %v100
    %v117 = vpack.c.bf16 %v109, %v101
    %v118 = vpack.c.bf16 %v110, %v102
    %v119 = vpack.c.bf16 %v111, %v103
    %v120 = vld [vmem:[#allocation5] sm:$0xff]
    %v121 = vld [vmem:[#allocation5 + $0x8] sm:$0xff]
    %v122 = vpack.c.bf16 %v121, %v120
    %v123 = vld [vmem:[#allocation7] sm:$0xff]
    %v124 = vld [vmem:[#allocation7 + $0x8] sm:$0xff]
    %v125 = vld [vmem:[#allocation7 + $0x10] sm:$0xff]
    %v126 = vld [vmem:[#allocation7 + $0x18] sm:$0xff]
    %v127 = vld [vmem:[#allocation7 + $0x20] sm:$0xff]
    %v128 = vld [vmem:[#allocation7 + $0x28] sm:$0xff]
    %v129 = vld [vmem:[#allocation7 + $0x30] sm:$0xff]
    %v130 = vld [vmem:[#allocation7 + $0x38] sm:$0xff]
    %v131 = vld [vmem:[#allocation7 + $0x40] sm:$0xff]
    %v132 = vld [vmem:[#allocation7 + $0x48] sm:$0xff]
    %v133 = vld [vmem:[#allocation7 + $0x50] sm:$0xff]
    %v134 = vld [vmem:[#allocation7 + $0x58] sm:$0xff]
    %v135 = vld [vmem:[#allocation7 + $0x60] sm:$0xff]
    %v136 = vld [vmem:[#allocation7 + $0x68] sm:$0xff]
    %v137 = vld [vmem:[#allocation7 + $0x70] sm:$0xff]
    %v138 = vld [vmem:[#allocation7 + $0x78] sm:$0xff]
    %v139 = vld [vmem:[#allocation7 + $0x80] sm:$0xff]
    %v140 = vld [vmem:[#allocation7 + $0x88] sm:$0xff]
    %v141 = vld [vmem:[#allocation7 + $0x90] sm:$0xff]
    %v142 = vld [vmem:[#allocation7 + $0x98] sm:$0xff]
    %v143 = vld [vmem:[#allocation7 + $0xa0] sm:$0xff]
    %v144 = vld [vmem:[#allocation7 + $0xa8] sm:$0xff]
    %v145 = vld [vmem:[#allocation7 + $0xb0] sm:$0xff]
    %v146 = vld [vmem:[#allocation7 + $0xb8] sm:$0xff]
    %v147 = vld [vmem:[#allocation7 + $0xc0] sm:$0xff]
    %v148 = vld [vmem:[#allocation7 + $0xc8] sm:$0xff]
    %v149 = vld [vmem:[#allocation7 + $0xd0] sm:$0xff]
    %v150 = vld [vmem:[#allocation7 + $0xd8] sm:$0xff]
    %v151 = vld [vmem:[#allocation7 + $0xe0] sm:$0xff]
    %v152 = vld [vmem:[#allocation7 + $0xe8] sm:$0xff]
    %v153 = vld [vmem:[#allocation7 + $0xf0] sm:$0xff]
    %v154 = vld [vmem:[#allocation7 + $0xf8] sm:$0xff]
    %v155 = vld [vmem:[#allocation7 + $0x100] sm:$0xff]
    %v156 = vld [vmem:[#allocation7 + $0x108] sm:$0xff]
    %v157 = vld [vmem:[#allocation7 + $0x110] sm:$0xff]
    %v158 = vld [vmem:[#allocation7 + $0x118] sm:$0xff]
    %v159 = vld [vmem:[#allocation7 + $0x120] sm:$0xff]
    %v160 = vld [vmem:[#allocation7 + $0x128] sm:$0xff]
    %v161 = vld [vmem:[#allocation7 + $0x130] sm:$0xff]
    %v162 = vld [vmem:[#allocation7 + $0x138] sm:$0xff]
    %v163 = vld [vmem:[#allocation7 + $0x140] sm:$0xff]
    %v164 = vld [vmem:[#allocation7 + $0x148] sm:$0xff]
    %v165 = vld [vmem:[#allocation7 + $0x150] sm:$0xff]
    %v166 = vld [vmem:[#allocation7 + $0x158] sm:$0xff]
    %v167 = vld [vmem:[#allocation7 + $0x160] sm:$0xff]
    %v168 = vld [vmem:[#allocation7 + $0x168] sm:$0xff]
    %v169 = vld [vmem:[#allocation7 + $0x170] sm:$0xff]
    %v170 = vld [vmem:[#allocation7 + $0x178] sm:$0xff]
    %v171 = vld [vmem:[#allocation7 + $0x180] sm:$0xff]
    %v172 = vld [vmem:[#allocation7 + $0x188] sm:$0xff]
    %v173 = vld [vmem:[#allocation7 + $0x190] sm:$0xff]
    %v174 = vld [vmem:[#allocation7 + $0x198] sm:$0xff]
    %v175 = vld [vmem:[#allocation7 + $0x1a0] sm:$0xff]
    %v176 = vld [vmem:[#allocation7 + $0x1a8] sm:$0xff]
    %v177 = vld [vmem:[#allocation7 + $0x1b0] sm:$0xff]
    %v178 = vld [vmem:[#allocation7 + $0x1b8] sm:$0xff]
    %v179 = vld [vmem:[#allocation7 + $0x1c0] sm:$0xff]
    %v180 = vld [vmem:[#allocation7 + $0x1c8] sm:$0xff]
    %v181 = vld [vmem:[#allocation7 + $0x1d0] sm:$0xff]
    %v182 = vld [vmem:[#allocation7 + $0x1d8] sm:$0xff]
    %v183 = vld [vmem:[#allocation7 + $0x1e0] sm:$0xff]
    %v184 = vld [vmem:[#allocation7 + $0x1e8] sm:$0xff]
    %v185 = vld [vmem:[#allocation7 + $0x1f0] sm:$0xff]
    %v186 = vld [vmem:[#allocation7 + $0x1f8] sm:$0xff]
    %v187 = vld [vmem:[#allocation7 + $0x200] sm:$0xff]
    %v188 = vld [vmem:[#allocation7 + $0x208] sm:$0xff]
    %v189 = vld [vmem:[#allocation7 + $0x210] sm:$0xff]
    %v190 = vld [vmem:[#allocation7 + $0x218] sm:$0xff]
    %v191 = vld [vmem:[#allocation7 + $0x220] sm:$0xff]
    %v192 = vld [vmem:[#allocation7 + $0x228] sm:$0xff]
    %v193 = vld [vmem:[#allocation7 + $0x230] sm:$0xff]
    %v194 = vld [vmem:[#allocation7 + $0x238] sm:$0xff]
    %v195 = vld [vmem:[#allocation7 + $0x240] sm:$0xff]
    %v196 = vld [vmem:[#allocation7 + $0x248] sm:$0xff]
    %v197 = vld [vmem:[#allocation7 + $0x250] sm:$0xff]
    %v198 = vld [vmem:[#allocation7 + $0x258] sm:$0xff]
    %v199 = vld [vmem:[#allocation7 + $0x260] sm:$0xff]
    %v200 = vld [vmem:[#allocation7 + $0x268] sm:$0xff]
    %v201 = vld [vmem:[#allocation7 + $0x270] sm:$0xff]
    %v202 = vld [vmem:[#allocation7 + $0x278] sm:$0xff]
    %v203 = vld [vmem:[#allocation7 + $0x280] sm:$0xff]
    %v204 = vld [vmem:[#allocation7 + $0x288] sm:$0xff]
    %v205 = vld [vmem:[#allocation7 + $0x290] sm:$0xff]
    %v206 = vld [vmem:[#allocation7 + $0x298] sm:$0xff]
    %v207 = vld [vmem:[#allocation7 + $0x2a0] sm:$0xff]
    %v208 = vld [vmem:[#allocation7 + $0x2a8] sm:$0xff]
    %v209 = vld [vmem:[#allocation7 + $0x2b0] sm:$0xff]
    %v210 = vld [vmem:[#allocation7 + $0x2b8] sm:$0xff]
    %v211 = vld [vmem:[#allocation7 + $0x2c0] sm:$0xff]
    %v212 = vld [vmem:[#allocation7 + $0x2c8] sm:$0xff]
    %v213 = vld [vmem:[#allocation7 + $0x2d0] sm:$0xff]
    %v214 = vld [vmem:[#allocation7 + $0x2d8] sm:$0xff]
    %v215 = vld [vmem:[#allocation7 + $0x2e0] sm:$0xff]
    %v216 = vld [vmem:[#allocation7 + $0x2e8] sm:$0xff]
    %v217 = vld [vmem:[#allocation7 + $0x2f0] sm:$0xff]
    %v218 = vld [vmem:[#allocation7 + $0x2f8] sm:$0xff]
    %v219 = vld [vmem:[#allocation7 + $0x300] sm:$0xff]
    %v220 = vld [vmem:[#allocation7 + $0x308] sm:$0xff]
    %v221 = vld [vmem:[#allocation7 + $0x310] sm:$0xff]
    %v222 = vld [vmem:[#allocation7 + $0x318] sm:$0xff]
    %v223 = vld [vmem:[#allocation7 + $0x320] sm:$0xff]
    %v224 = vld [vmem:[#allocation7 + $0x328] sm:$0xff]
    %v225 = vld [vmem:[#allocation7 + $0x330] sm:$0xff]
    %v226 = vld [vmem:[#allocation7 + $0x338] sm:$0xff]
    %v227 = vld [vmem:[#allocation7 + $0x340] sm:$0xff]
    %v228 = vld [vmem:[#allocation7 + $0x348] sm:$0xff]
    %v229 = vld [vmem:[#allocation7 + $0x350] sm:$0xff]
    %v230 = vld [vmem:[#allocation7 + $0x358] sm:$0xff]
    %v231 = vld [vmem:[#allocation7 + $0x360] sm:$0xff]
    %v232 = vld [vmem:[#allocation7 + $0x368] sm:$0xff]
    %v233 = vld [vmem:[#allocation7 + $0x370] sm:$0xff]
    %v234 = vld [vmem:[#allocation7 + $0x378] sm:$0xff]
    %v235 = vld [vmem:[#allocation7 + $0x380] sm:$0xff]
    %v236 = vld [vmem:[#allocation7 + $0x388] sm:$0xff]
    %v237 = vld [vmem:[#allocation7 + $0x390] sm:$0xff]
    %v238 = vld [vmem:[#allocation7 + $0x398] sm:$0xff]
    %v239 = vld [vmem:[#allocation7 + $0x3a0] sm:$0xff]
    %v240 = vld [vmem:[#allocation7 + $0x3a8] sm:$0xff]
    %v241 = vld [vmem:[#allocation7 + $0x3b0] sm:$0xff]
    %v242 = vld [vmem:[#allocation7 + $0x3b8] sm:$0xff]
    %v243 = vld [vmem:[#allocation7 + $0x3c0] sm:$0xff]
    %v244 = vld [vmem:[#allocation7 + $0x3c8] sm:$0xff]
    %v245 = vld [vmem:[#allocation7 + $0x3d0] sm:$0xff]
    %v246 = vld [vmem:[#allocation7 + $0x3d8] sm:$0xff]
    %v247 = vld [vmem:[#allocation7 + $0x3e0] sm:$0xff]
    %v248 = vld [vmem:[#allocation7 + $0x3e8] sm:$0xff]
    %v249 = vld [vmem:[#allocation7 + $0x3f0] sm:$0xff]
    %v250 = vld [vmem:[#allocation7 + $0x3f8] sm:$0xff]
    %v251 = vld [vmem:[#allocation7 + $0x400] sm:$0xff]
    %v252 = vld [vmem:[#allocation7 + $0x408] sm:$0xff]
    %v253 = vld [vmem:[#allocation7 + $0x410] sm:$0xff]
    %v254 = vld [vmem:[#allocation7 + $0x418] sm:$0xff]
    %v255 = vld [vmem:[#allocation7 + $0x420] sm:$0xff]
    %v256 = vld [vmem:[#allocation7 + $0x428] sm:$0xff]
    %v257 = vld [vmem:[#allocation7 + $0x430] sm:$0xff]
    %v258 = vld [vmem:[#allocation7 + $0x438] sm:$0xff]
    %v259 = vld [vmem:[#allocation7 + $0x440] sm:$0xff]
    %v260 = vld [vmem:[#allocation7 + $0x448] sm:$0xff]
    %v261 = vld [vmem:[#allocation7 + $0x450] sm:$0xff]
    %v262 = vld [vmem:[#allocation7 + $0x458] sm:$0xff]
    %v263 = vld [vmem:[#allocation7 + $0x460] sm:$0xff]
    %v264 = vld [vmem:[#allocation7 + $0x468] sm:$0xff]
    %v265 = vld [vmem:[#allocation7 + $0x470] sm:$0xff]
    %v266 = vld [vmem:[#allocation7 + $0x478] sm:$0xff]
    %v267 = vld [vmem:[#allocation7 + $0x480] sm:$0xff]
    %v268 = vld [vmem:[#allocation7 + $0x488] sm:$0xff]
    %v269 = vld [vmem:[#allocation7 + $0x490] sm:$0xff]
    %v270 = vld [vmem:[#allocation7 + $0x498] sm:$0xff]
    %v271 = vld [vmem:[#allocation7 + $0x4a0] sm:$0xff]
    %v272 = vld [vmem:[#allocation7 + $0x4a8] sm:$0xff]
    %v273 = vld [vmem:[#allocation7 + $0x4b0] sm:$0xff]
    %v274 = vld [vmem:[#allocation7 + $0x4b8] sm:$0xff]
    %v275 = vld [vmem:[#allocation7 + $0x4c0] sm:$0xff]
    %v276 = vld [vmem:[#allocation7 + $0x4c8] sm:$0xff]
    %v277 = vld [vmem:[#allocation7 + $0x4d0] sm:$0xff]
    %v278 = vld [vmem:[#allocation7 + $0x4d8] sm:$0xff]
    %v279 = vld [vmem:[#allocation7 + $0x4e0] sm:$0xff]
    %v280 = vld [vmem:[#allocation7 + $0x4e8] sm:$0xff]
    %v281 = vld [vmem:[#allocation7 + $0x4f0] sm:$0xff]
    %v282 = vld [vmem:[#allocation7 + $0x4f8] sm:$0xff]
    %v283 = vld [vmem:[#allocation7 + $0x500] sm:$0xff]
    %v284 = vld [vmem:[#allocation7 + $0x508] sm:$0xff]
    %v285 = vld [vmem:[#allocation7 + $0x510] sm:$0xff]
    %v286 = vld [vmem:[#allocation7 + $0x518] sm:$0xff]
    %v287 = vld [vmem:[#allocation7 + $0x520] sm:$0xff]
    %v288 = vld [vmem:[#allocation7 + $0x528] sm:$0xff]
    %v289 = vld [vmem:[#allocation7 + $0x530] sm:$0xff]
    %v290 = vld [vmem:[#allocation7 + $0x538] sm:$0xff]
    %v291 = vld [vmem:[#allocation7 + $0x540] sm:$0xff]
    %v292 = vld [vmem:[#allocation7 + $0x548] sm:$0xff]
    %v293 = vld [vmem:[#allocation7 + $0x550] sm:$0xff]
    %v294 = vld [vmem:[#allocation7 + $0x558] sm:$0xff]
    %v295 = vld [vmem:[#allocation7 + $0x560] sm:$0xff]
    %v296 = vld [vmem:[#allocation7 + $0x568] sm:$0xff]
    %v297 = vld [vmem:[#allocation7 + $0x570] sm:$0xff]
    %v298 = vld [vmem:[#allocation7 + $0x578] sm:$0xff]
    %v299 = vld [vmem:[#allocation7 + $0x580] sm:$0xff]
    %v300 = vld [vmem:[#allocation7 + $0x588] sm:$0xff]
    %v301 = vld [vmem:[#allocation7 + $0x590] sm:$0xff]
    %v302 = vld [vmem:[#allocation7 + $0x598] sm:$0xff]
    %v303 = vld [vmem:[#allocation7 + $0x5a0] sm:$0xff]
    %v304 = vld [vmem:[#allocation7 + $0x5a8] sm:$0xff]
    %v305 = vld [vmem:[#allocation7 + $0x5b0] sm:$0xff]
    %v306 = vld [vmem:[#allocation7 + $0x5b8] sm:$0xff]
    %v307 = vld [vmem:[#allocation7 + $0x5c0] sm:$0xff]
    %v308 = vld [vmem:[#allocation7 + $0x5c8] sm:$0xff]
    %v309 = vld [vmem:[#allocation7 + $0x5d0] sm:$0xff]
    %v310 = vld [vmem:[#allocation7 + $0x5d8] sm:$0xff]
    %v311 = vld [vmem:[#allocation7 + $0x5e0] sm:$0xff]
    %v312 = vld [vmem:[#allocation7 + $0x5e8] sm:$0xff]
    %v313 = vld [vmem:[#allocation7 + $0x5f0] sm:$0xff]
    %v314 = vld [vmem:[#allocation7 + $0x5f8] sm:$0xff]
    %v315 = vld [vmem:[#allocation7 + $0x600] sm:$0xff]
    %v316 = vld [vmem:[#allocation7 + $0x608] sm:$0xff]
    %v317 = vld [vmem:[#allocation7 + $0x610] sm:$0xff]
    %v318 = vld [vmem:[#allocation7 + $0x618] sm:$0xff]
    %v319 = vld [vmem:[#allocation7 + $0x620] sm:$0xff]
    %v320 = vld [vmem:[#allocation7 + $0x628] sm:$0xff]
    %v321 = vld [vmem:[#allocation7 + $0x630] sm:$0xff]
    %v322 = vld [vmem:[#allocation7 + $0x638] sm:$0xff]
    %v323 = vld [vmem:[#allocation7 + $0x640] sm:$0xff]
    %v324 = vld [vmem:[#allocation7 + $0x648] sm:$0xff]
    %v325 = vld [vmem:[#allocation7 + $0x650] sm:$0xff]
    %v326 = vld [vmem:[#allocation7 + $0x658] sm:$0xff]
    %v327 = vld [vmem:[#allocation7 + $0x660] sm:$0xff]
    %v328 = vld [vmem:[#allocation7 + $0x668] sm:$0xff]
    %v329 = vld [vmem:[#allocation7 + $0x670] sm:$0xff]
    %v330 = vld [vmem:[#allocation7 + $0x678] sm:$0xff]
    %v331 = vld [vmem:[#allocation7 + $0x680] sm:$0xff]
    %v332 = vld [vmem:[#allocation7 + $0x688] sm:$0xff]
    %v333 = vld [vmem:[#allocation7 + $0x690] sm:$0xff]
    %v334 = vld [vmem:[#allocation7 + $0x698] sm:$0xff]
    %v335 = vld [vmem:[#allocation7 + $0x6a0] sm:$0xff]
    %v336 = vld [vmem:[#allocation7 + $0x6a8] sm:$0xff]
    %v337 = vld [vmem:[#allocation7 + $0x6b0] sm:$0xff]
    %v338 = vld [vmem:[#allocation7 + $0x6b8] sm:$0xff]
    %v339 = vld [vmem:[#allocation7 + $0x6c0] sm:$0xff]
    %v340 = vld [vmem:[#allocation7 + $0x6c8] sm:$0xff]
    %v341 = vld [vmem:[#allocation7 + $0x6d0] sm:$0xff]
    %v342 = vld [vmem:[#allocation7 + $0x6d8] sm:$0xff]
    %v343 = vld [vmem:[#allocation7 + $0x6e0] sm:$0xff]
    %v344 = vld [vmem:[#allocation7 + $0x6e8] sm:$0xff]
    %v345 = vld [vmem:[#allocation7 + $0x6f0] sm:$0xff]
    %v346 = vld [vmem:[#allocation7 + $0x6f8] sm:$0xff]
    %v347 = vld [vmem:[#allocation7 + $0x700] sm:$0xff]
    %v348 = vld [vmem:[#allocation7 + $0x708] sm:$0xff]
    %v349 = vld [vmem:[#allocation7 + $0x710] sm:$0xff]
    %v350 = vld [vmem:[#allocation7 + $0x718] sm:$0xff]
    %v351 = vld [vmem:[#allocation7 + $0x720] sm:$0xff]
    %v352 = vld [vmem:[#allocation7 + $0x728] sm:$0xff]
    %v353 = vld [vmem:[#allocation7 + $0x730] sm:$0xff]
    %v354 = vld [vmem:[#allocation7 + $0x738] sm:$0xff]
    %v355 = vld [vmem:[#allocation7 + $0x740] sm:$0xff]
    %v356 = vld [vmem:[#allocation7 + $0x748] sm:$0xff]
    %v357 = vld [vmem:[#allocation7 + $0x750] sm:$0xff]
    %v358 = vld [vmem:[#allocation7 + $0x758] sm:$0xff]
    %v359 = vld [vmem:[#allocation7 + $0x760] sm:$0xff]
    %v360 = vld [vmem:[#allocation7 + $0x768] sm:$0xff]
    %v361 = vld [vmem:[#allocation7 + $0x770] sm:$0xff]
    %v362 = vld [vmem:[#allocation7 + $0x778] sm:$0xff]
    %v363 = vld [vmem:[#allocation7 + $0x780] sm:$0xff]
    %v364 = vld [vmem:[#allocation7 + $0x788] sm:$0xff]
    %v365 = vld [vmem:[#allocation7 + $0x790] sm:$0xff]
    %v366 = vld [vmem:[#allocation7 + $0x798] sm:$0xff]
    %v367 = vld [vmem:[#allocation7 + $0x7a0] sm:$0xff]
    %v368 = vld [vmem:[#allocation7 + $0x7a8] sm:$0xff]
    %v369 = vld [vmem:[#allocation7 + $0x7b0] sm:$0xff]
    %v370 = vld [vmem:[#allocation7 + $0x7b8] sm:$0xff]
    %v371 = vld [vmem:[#allocation7 + $0x7c0] sm:$0xff]
    %v372 = vld [vmem:[#allocation7 + $0x7c8] sm:$0xff]
    %v373 = vld [vmem:[#allocation7 + $0x7d0] sm:$0xff]
    %v374 = vld [vmem:[#allocation7 + $0x7d8] sm:$0xff]
    %v375 = vld [vmem:[#allocation7 + $0x7e0] sm:$0xff]
    %v376 = vld [vmem:[#allocation7 + $0x7e8] sm:$0xff]
    %v377 = vld [vmem:[#allocation7 + $0x7f0] sm:$0xff]
    %v378 = vld [vmem:[#allocation7 + $0x7f8] sm:$0xff]
    %v379 = vld [vmem:[#allocation8] sm:$0xff]
    %v380 = vld [vmem:[#allocation8 + $0x8] sm:$0xff]
    %v381 = vld [vmem:[#allocation8 + $0x10] sm:$0xff]
    %v382 = vld [vmem:[#allocation8 + $0x18] sm:$0xff]
    %v383 = vld [vmem:[#allocation8 + $0x20] sm:$0xff]
    %v384 = vld [vmem:[#allocation8 + $0x28] sm:$0xff]
    %v385 = vld [vmem:[#allocation8 + $0x30] sm:$0xff]
    %v386 = vld [vmem:[#allocation8 + $0x38] sm:$0xff]
    %v395 = vunpack.c.l.b16 %v379
    %v396 = vunpack.c.h.b16 %v379
    %v397 = vunpack.c.l.b16 %v380
    %v398 = vunpack.c.h.b16 %v380
    %v399 = vunpack.c.l.b16 %v381
    %v400 = vunpack.c.h.b16 %v381
    %v401 = vunpack.c.l.b16 %v382
    %v402 = vunpack.c.h.b16 %v382
    %v403 = vunpack.c.l.b16 %v383
    %v404 = vunpack.c.h.b16 %v383
    %v405 = vunpack.c.l.b16 %v384
    %v406 = vunpack.c.h.b16 %v384
    %v407 = vunpack.c.l.b16 %v385
    %v408 = vunpack.c.h.b16 %v385
    %v409 = vunpack.c.l.b16 %v386
    %v410 = vunpack.c.h.b16 %v386
    %v411 = vpack.c.b16 %v399, %v395
    %v412 = vpack.c.b16 %v400, %v396
    %v413 = vpack.c.b16 %v401, %v397
    %v414 = vpack.c.b16 %v402, %v398
    %v415 = vpack.c.b16 %v407, %v403
    %v416 = vpack.c.b16 %v408, %v404
    %v417 = vpack.c.b16 %v409, %v405
    %v418 = vpack.c.b16 %v410, %v406
    %vm427 = vcmask 261120
    %v429 = vsel %vm427, %v122, 0
    %431 = vmatprep.subr.bf16.mxu0 0
    %432 = vmatpush1.bf16.msra.mxu0 0
    %433 = vmatprep.subr.bf16.mxu0 0
    %434 = vmatpush1.bf16.msra.mxu0 0
    %435 = vmatprep.subr.bf16.mxu0 0
    %436 = vmatpush1.bf16.msra.mxu0 0
    %437 = vmatprep.subr.bf16.mxu0 0
    %438 = vmatpush1.bf16.msra.mxu0 0
    %439 = vmatprep.subr.bf16.mxu0 0
    %440 = vmatpush1.bf16.msra.mxu0 0
    %441 = vmatprep.subr.bf16.mxu0 0
    %442 = vmatpush1.bf16.msra.mxu0 0
    %443 = vmatprep.subr.bf16.mxu0 %v416
    %444 = vmatpush1.bf16.msra.mxu0 %v415
    %445 = vmatprep.subr.bf16.mxu0 %v412
    %446 = vmatpush1.bf16.msra.mxu0 %v411
    %447 = vmatprep.subr.bf16.mxu0 0
    %448 = vmatpush2.bf16.msra.mxu0 0
    %449 = vmatprep.subr.bf16.mxu0 0
    %450 = vmatpush2.bf16.msra.mxu0 0
    %451 = vmatprep.subr.bf16.mxu0 0
    %452 = vmatpush2.bf16.msra.mxu0 0
    %453 = vmatprep.subr.bf16.mxu0 0
    %454 = vmatpush2.bf16.msra.mxu0 0
    %455 = vmatprep.subr.bf16.mxu0 0
    %456 = vmatpush2.bf16.msra.mxu0 0
    %457 = vmatprep.subr.bf16.mxu0 0
    %458 = vmatpush2.bf16.msra.mxu0 0
    %459 = vmatprep.subr.bf16.mxu0 0
    %460 = vmatpush2.bf16.msra.mxu0 0
    %461 = vmatprep.subr.bf16.mxu0 0
    %462 = vmatpush2.bf16.msra.mxu0 0
    %463 = vmatprep.mubr.bf16.mxu0 0
    %464 = vmatmul.mubr.bf16.gmra.mxu0 %v429
    %v465 = vpop.f32.mrf.mxu0
    %v466 = vadd.f32 0.0, %v465
    %v467 = vpop.f32.mrf.mxu0
    %v468 = vadd.f32 0.0, %v467
    %v469 = vpop.f32.mrf.mxu0
    %v470 = vadd.f32 0.0, %v469
    %v471 = vpop.f32.mrf.mxu0
    %v472 = vadd.f32 0.0, %v471
    %473 = vdwg.mxu0
    %474 = vmatprep.subr.bf16.mxu0 0
    %475 = vmatpush1.bf16.msra.mxu0 0
    %476 = vmatprep.subr.bf16.mxu0 0
    %477 = vmatpush1.bf16.msra.mxu0 0
    %478 = vmatprep.subr.bf16.mxu0 0
    %479 = vmatpush1.bf16.msra.mxu0 0
    %480 = vmatprep.subr.bf16.mxu0 0
    %481 = vmatpush1.bf16.msra.mxu0 0
    %482 = vmatprep.subr.bf16.mxu0 0
    %483 = vmatpush1.bf16.msra.mxu0 0
    %484 = vmatprep.subr.bf16.mxu0 0
    %485 = vmatpush1.bf16.msra.mxu0 0
    %486 = vmatprep.subr.bf16.mxu0 %v418
    %487 = vmatpush1.bf16.msra.mxu0 %v417
    %488 = vmatprep.subr.bf16.mxu0 %v414
    %489 = vmatpush1.bf16.msra.mxu0 %v413
    %490 = vmatprep.subr.bf16.mxu0 0
    %491 = vmatpush2.bf16.msra.mxu0 0
    %492 = vmatprep.subr.bf16.mxu0 0
    %493 = vmatpush2.bf16.msra.mxu0 0
    %494 = vmatprep.subr.bf16.mxu0 0
    %495 = vmatpush2.bf16.msra.mxu0 0
    %496 = vmatprep.subr.bf16.mxu0 0
    %497 = vmatpush2.bf16.msra.mxu0 0
    %498 = vmatprep.subr.bf16.mxu0 0
    %499 = vmatpush2.bf16.msra.mxu0 0
    %500 = vmatprep.subr.bf16.mxu0 0
    %501 = vmatpush2.bf16.msra.mxu0 0
    %502 = vmatprep.subr.bf16.mxu0 0
    %503 = vmatpush2.bf16.msra.mxu0 0
    %504 = vmatprep.subr.bf16.mxu0 0
    %505 = vmatpush2.bf16.msra.mxu0 0
    %506 = vmatprep.mubr.bf16.mxu0 0
    %507 = vmatmul.mubr.bf16.gmra.mxu0 %v429
    %v508 = vpop.f32.mrf.mxu0
    %v509 = vadd.f32 0.0, %v508
    %v510 = vpop.f32.mrf.mxu0
    %v511 = vadd.f32 0.0, %v510
    %v512 = vpop.f32.mrf.mxu0
    %v513 = vadd.f32 0.0, %v512
    %v514 = vpop.f32.mrf.mxu0
    %v515 = vadd.f32 0.0, %v514
    %516 = vdwg.mxu0
    %v773 = vunpack.c.l.b16 %v123
    %v774 = vunpack.c.h.b16 %v123
    %v775 = vunpack.c.l.b16 %v124
    %v776 = vunpack.c.h.b16 %v124
    %v777 = vunpack.c.l.b16 %v125
    %v778 = vunpack.c.h.b16 %v125
    %v779 = vunpack.c.l.b16 %v126
    %v780 = vunpack.c.h.b16 %v126
    %v781 = vunpack.c.l.b16 %v127
    %v782 = vunpack.c.h.b16 %v127
    %v783 = vunpack.c.l.b16 %v128
    %v784 = vunpack.c.h.b16 %v128
    %v785 = vunpack.c.l.b16 %v129
    %v786 = vunpack.c.h.b16 %v129
    %v787 = vunpack.c.l.b16 %v130
    %v788 = vunpack.c.h.b16 %v130
    %v789 = vunpack.c.l.b16 %v131
    %v790 = vunpack.c.h.b16 %v131
    %v791 = vunpack.c.l.b16 %v132
    %v792 = vunpack.c.h.b16 %v132
    %v793 = vunpack.c.l.b16 %v133
    %v794 = vunpack.c.h.b16 %v133
    %v795 = vunpack.c.l.b16 %v134
    %v796 = vunpack.c.h.b16 %v134
    %v797 = vunpack.c.l.b16 %v135
    %v798 = vunpack.c.h.b16 %v135
    %v799 = vunpack.c.l.b16 %v136
    %v800 = vunpack.c.h.b16 %v136
    %v801 = vunpack.c.l.b16 %v137
    %v802 = vunpack.c.h.b16 %v137
    %v803 = vunpack.c.l.b16 %v138
    %v804 = vunpack.c.h.b16 %v138
    %v805 = vunpack.c.l.b16 %v139
    %v806 = vunpack.c.h.b16 %v139
    %v807 = vunpack.c.l.b16 %v140
    %v808 = vunpack.c.h.b16 %v140
    %v809 = vunpack.c.l.b16 %v141
    %v810 = vunpack.c.h.b16 %v141
    %v811 = vunpack.c.l.b16 %v142
    %v812 = vunpack.c.h.b16 %v142
    %v813 = vunpack.c.l.b16 %v143
    %v814 = vunpack.c.h.b16 %v143
    %v815 = vunpack.c.l.b16 %v144
    %v816 = vunpack.c.h.b16 %v144
    %v817 = vunpack.c.l.b16 %v145
    %v818 = vunpack.c.h.b16 %v145
    %v819 = vunpack.c.l.b16 %v146
    %v820 = vunpack.c.h.b16 %v146
    %v821 = vunpack.c.l.b16 %v147
    %v822 = vunpack.c.h.b16 %v147
    %v823 = vunpack.c.l.b16 %v148
    %v824 = vunpack.c.h.b16 %v148
    %v825 = vunpack.c.l.b16 %v149
    %v826 = vunpack.c.h.b16 %v149
    %v827 = vunpack.c.l.b16 %v150
    %v828 = vunpack.c.h.b16 %v150
    %v829 = vunpack.c.l.b16 %v151
    %v830 = vunpack.c.h.b16 %v151
    %v831 = vunpack.c.l.b16 %v152
    %v832 = vunpack.c.h.b16 %v152
    %v833 = vunpack.c.l.b16 %v153
    %v834 = vunpack.c.h.b16 %v153
    %v835 = vunpack.c.l.b16 %v154
    %v836 = vunpack.c.h.b16 %v154
    %v837 = vunpack.c.l.b16 %v155
    %v838 = vunpack.c.h.b16 %v155
    %v839 = vunpack.c.l.b16 %v156
    %v840 = vunpack.c.h.b16 %v156
    %v841 = vunpack.c.l.b16 %v157
    %v842 = vunpack.c.h.b16 %v157
    %v843 = vunpack.c.l.b16 %v158
    %v844 = vunpack.c.h.b16 %v158
    %v845 = vunpack.c.l.b16 %v159
    %v846 = vunpack.c.h.b16 %v159
    %v847 = vunpack.c.l.b16 %v160
    %v848 = vunpack.c.h.b16 %v160
    %v849 = vunpack.c.l.b16 %v161
    %v850 = vunpack.c.h.b16 %v161
    %v851 = vunpack.c.l.b16 %v162
    %v852 = vunpack.c.h.b16 %v162
    %v853 = vunpack.c.l.b16 %v163
    %v854 = vunpack.c.h.b16 %v163
    %v855 = vunpack.c.l.b16 %v164
    %v856 = vunpack.c.h.b16 %v164
    %v857 = vunpack.c.l.b16 %v165
    %v858 = vunpack.c.h.b16 %v165
    %v859 = vunpack.c.l.b16 %v166
    %v860 = vunpack.c.h.b16 %v166
    %v861 = vunpack.c.l.b16 %v167
    %v862 = vunpack.c.h.b16 %v167
    %v863 = vunpack.c.l.b16 %v168
    %v864 = vunpack.c.h.b16 %v168
    %v865 = vunpack.c.l.b16 %v169
    %v866 = vunpack.c.h.b16 %v169
    %v867 = vunpack.c.l.b16 %v170
    %v868 = vunpack.c.h.b16 %v170
    %v869 = vunpack.c.l.b16 %v171
    %v870 = vunpack.c.h.b16 %v171
    %v871 = vunpack.c.l.b16 %v172
    %v872 = vunpack.c.h.b16 %v172
    %v873 = vunpack.c.l.b16 %v173
    %v874 = vunpack.c.h.b16 %v173
    %v875 = vunpack.c.l.b16 %v174
    %v876 = vunpack.c.h.b16 %v174
    %v877 = vunpack.c.l.b16 %v175
    %v878 = vunpack.c.h.b16 %v175
    %v879 = vunpack.c.l.b16 %v176
    %v880 = vunpack.c.h.b16 %v176
    %v881 = vunpack.c.l.b16 %v177
    %v882 = vunpack.c.h.b16 %v177
    %v883 = vunpack.c.l.b16 %v178
    %v884 = vunpack.c.h.b16 %v178
    %v885 = vunpack.c.l.b16 %v179
    %v886 = vunpack.c.h.b16 %v179
    %v887 = vunpack.c.l.b16 %v180
    %v888 = vunpack.c.h.b16 %v180
    %v889 = vunpack.c.l.b16 %v181
    %v890 = vunpack.c.h.b16 %v181
    %v891 = vunpack.c.l.b16 %v182
    %v892 = vunpack.c.h.b16 %v182
    %v893 = vunpack.c.l.b16 %v183
    %v894 = vunpack.c.h.b16 %v183
    %v895 = vunpack.c.l.b16 %v184
    %v896 = vunpack.c.h.b16 %v184
    %v897 = vunpack.c.l.b16 %v185
    %v898 = vunpack.c.h.b16 %v185
    %v899 = vunpack.c.l.b16 %v186
    %v900 = vunpack.c.h.b16 %v186
    %v901 = vunpack.c.l.b16 %v187
    %v902 = vunpack.c.h.b16 %v187
    %v903 = vunpack.c.l.b16 %v188
    %v904 = vunpack.c.h.b16 %v188
    %v905 = vunpack.c.l.b16 %v189
    %v906 = vunpack.c.h.b16 %v189
    %v907 = vunpack.c.l.b16 %v190
    %v908 = vunpack.c.h.b16 %v190
    %v909 = vunpack.c.l.b16 %v191
    %v910 = vunpack.c.h.b16 %v191
    %v911 = vunpack.c.l.b16 %v192
    %v912 = vunpack.c.h.b16 %v192
    %v913 = vunpack.c.l.b16 %v193
    %v914 = vunpack.c.h.b16 %v193
    %v915 = vunpack.c.l.b16 %v194
    %v916 = vunpack.c.h.b16 %v194
    %v917 = vunpack.c.l.b16 %v195
    %v918 = vunpack.c.h.b16 %v195
    %v919 = vunpack.c.l.b16 %v196
    %v920 = vunpack.c.h.b16 %v196
    %v921 = vunpack.c.l.b16 %v197
    %v922 = vunpack.c.h.b16 %v197
    %v923 = vunpack.c.l.b16 %v198
    %v924 = vunpack.c.h.b16 %v198
    %v925 = vunpack.c.l.b16 %v199
    %v926 = vunpack.c.h.b16 %v199
    %v927 = vunpack.c.l.b16 %v200
    %v928 = vunpack.c.h.b16 %v200
    %v929 = vunpack.c.l.b16 %v201
    %v930 = vunpack.c.h.b16 %v201
    %v931 = vunpack.c.l.b16 %v202
    %v932 = vunpack.c.h.b16 %v202
    %v933 = vunpack.c.l.b16 %v203
    %v934 = vunpack.c.h.b16 %v203
    %v935 = vunpack.c.l.b16 %v204
    %v936 = vunpack.c.h.b16 %v204
    %v937 = vunpack.c.l.b16 %v205
    %v938 = vunpack.c.h.b16 %v205
    %v939 = vunpack.c.l.b16 %v206
    %v940 = vunpack.c.h.b16 %v206
    %v941 = vunpack.c.l.b16 %v207
    %v942 = vunpack.c.h.b16 %v207
    %v943 = vunpack.c.l.b16 %v208
    %v944 = vunpack.c.h.b16 %v208
    %v945 = vunpack.c.l.b16 %v209
    %v946 = vunpack.c.h.b16 %v209
    %v947 = vunpack.c.l.b16 %v210
    %v948 = vunpack.c.h.b16 %v210
    %v949 = vunpack.c.l.b16 %v211
    %v950 = vunpack.c.h.b16 %v211
    %v951 = vunpack.c.l.b16 %v212
    %v952 = vunpack.c.h.b16 %v212
    %v953 = vunpack.c.l.b16 %v213
    %v954 = vunpack.c.h.b16 %v213
    %v955 = vunpack.c.l.b16 %v214
    %v956 = vunpack.c.h.b16 %v214
    %v957 = vunpack.c.l.b16 %v215
    %v958 = vunpack.c.h.b16 %v215
    %v959 = vunpack.c.l.b16 %v216
    %v960 = vunpack.c.h.b16 %v216
    %v961 = vunpack.c.l.b16 %v217
    %v962 = vunpack.c.h.b16 %v217
    %v963 = vunpack.c.l.b16 %v218
    %v964 = vunpack.c.h.b16 %v218
    %v965 = vunpack.c.l.b16 %v219
    %v966 = vunpack.c.h.b16 %v219
    %v967 = vunpack.c.l.b16 %v220
    %v968 = vunpack.c.h.b16 %v220
    %v969 = vunpack.c.l.b16 %v221
    %v970 = vunpack.c.h.b16 %v221
    %v971 = vunpack.c.l.b16 %v222
    %v972 = vunpack.c.h.b16 %v222
    %v973 = vunpack.c.l.b16 %v223
    %v974 = vunpack.c.h.b16 %v223
    %v975 = vunpack.c.l.b16 %v224
    %v976 = vunpack.c.h.b16 %v224
    %v977 = vunpack.c.l.b16 %v225
    %v978 = vunpack.c.h.b16 %v225
    %v979 = vunpack.c.l.b16 %v226
    %v980 = vunpack.c.h.b16 %v226
    %v981 = vunpack.c.l.b16 %v227
    %v982 = vunpack.c.h.b16 %v227
    %v983 = vunpack.c.l.b16 %v228
    %v984 = vunpack.c.h.b16 %v228
    %v985 = vunpack.c.l.b16 %v229
    %v986 = vunpack.c.h.b16 %v229
    %v987 = vunpack.c.l.b16 %v230
    %v988 = vunpack.c.h.b16 %v230
    %v989 = vunpack.c.l.b16 %v231
    %v990 = vunpack.c.h.b16 %v231
    %v991 = vunpack.c.l.b16 %v232
    %v992 = vunpack.c.h.b16 %v232
    %v993 = vunpack.c.l.b16 %v233
    %v994 = vunpack.c.h.b16 %v233
    %v995 = vunpack.c.l.b16 %v234
    %v996 = vunpack.c.h.b16 %v234
    %v997 = vunpack.c.l.b16 %v235
    %v998 = vunpack.c.h.b16 %v235
    %v999 = vunpack.c.l.b16 %v236
    %v1000 = vunpack.c.h.b16 %v236
    %v1001 = vunpack.c.l.b16 %v237
    %v1002 = vunpack.c.h.b16 %v237
    %v1003 = vunpack.c.l.b16 %v238
    %v1004 = vunpack.c.h.b16 %v238
    %v1005 = vunpack.c.l.b16 %v239
    %v1006 = vunpack.c.h.b16 %v239
    %v1007 = vunpack.c.l.b16 %v240
    %v1008 = vunpack.c.h.b16 %v240
    %v1009 = vunpack.c.l.b16 %v241
    %v1010 = vunpack.c.h.b16 %v241
    %v1011 = vunpack.c.l.b16 %v242
    %v1012 = vunpack.c.h.b16 %v242
    %v1013 = vunpack.c.l.b16 %v243
    %v1014 = vunpack.c.h.b16 %v243
    %v1015 = vunpack.c.l.b16 %v244
    %v1016 = vunpack.c.h.b16 %v244
    %v1017 = vunpack.c.l.b16 %v245
    %v1018 = vunpack.c.h.b16 %v245
    %v1019 = vunpack.c.l.b16 %v246
    %v1020 = vunpack.c.h.b16 %v246
    %v1021 = vunpack.c.l.b16 %v247
    %v1022 = vunpack.c.h.b16 %v247
    %v1023 = vunpack.c.l.b16 %v248
    %v1024 = vunpack.c.h.b16 %v248
    %v1025 = vunpack.c.l.b16 %v249
    %v1026 = vunpack.c.h.b16 %v249
    %v1027 = vunpack.c.l.b16 %v250
    %v1028 = vunpack.c.h.b16 %v250
    %v1029 = vunpack.c.l.b16 %v251
    %v1030 = vunpack.c.h.b16 %v251
    %v1031 = vunpack.c.l.b16 %v252
    %v1032 = vunpack.c.h.b16 %v252
    %v1033 = vunpack.c.l.b16 %v253
    %v1034 = vunpack.c.h.b16 %v253
    %v1035 = vunpack.c.l.b16 %v254
    %v1036 = vunpack.c.h.b16 %v254
    %v1037 = vunpack.c.l.b16 %v255
    %v1038 = vunpack.c.h.b16 %v255
    %v1039 = vunpack.c.l.b16 %v256
    %v1040 = vunpack.c.h.b16 %v256
    %v1041 = vunpack.c.l.b16 %v257
    %v1042 = vunpack.c.h.b16 %v257
    %v1043 = vunpack.c.l.b16 %v258
    %v1044 = vunpack.c.h.b16 %v258
    %v1045 = vunpack.c.l.b16 %v259
    %v1046 = vunpack.c.h.b16 %v259
    %v1047 = vunpack.c.l.b16 %v260
    %v1048 = vunpack.c.h.b16 %v260
    %v1049 = vunpack.c.l.b16 %v261
    %v1050 = vunpack.c.h.b16 %v261
    %v1051 = vunpack.c.l.b16 %v262
    %v1052 = vunpack.c.h.b16 %v262
    %v1053 = vunpack.c.l.b16 %v263
    %v1054 = vunpack.c.h.b16 %v263
    %v1055 = vunpack.c.l.b16 %v264
    %v1056 = vunpack.c.h.b16 %v264
    %v1057 = vunpack.c.l.b16 %v265
    %v1058 = vunpack.c.h.b16 %v265
    %v1059 = vunpack.c.l.b16 %v266
    %v1060 = vunpack.c.h.b16 %v266
    %v1061 = vunpack.c.l.b16 %v267
    %v1062 = vunpack.c.h.b16 %v267
    %v1063 = vunpack.c.l.b16 %v268
    %v1064 = vunpack.c.h.b16 %v268
    %v1065 = vunpack.c.l.b16 %v269
    %v1066 = vunpack.c.h.b16 %v269
    %v1067 = vunpack.c.l.b16 %v270
    %v1068 = vunpack.c.h.b16 %v270
    %v1069 = vunpack.c.l.b16 %v271
    %v1070 = vunpack.c.h.b16 %v271
    %v1071 = vunpack.c.l.b16 %v272
    %v1072 = vunpack.c.h.b16 %v272
    %v1073 = vunpack.c.l.b16 %v273
    %v1074 = vunpack.c.h.b16 %v273
    %v1075 = vunpack.c.l.b16 %v274
    %v1076 = vunpack.c.h.b16 %v274
    %v1077 = vunpack.c.l.b16 %v275
    %v1078 = vunpack.c.h.b16 %v275
    %v1079 = vunpack.c.l.b16 %v276
    %v1080 = vunpack.c.h.b16 %v276
    %v1081 = vunpack.c.l.b16 %v277
    %v1082 = vunpack.c.h.b16 %v277
    %v1083 = vunpack.c.l.b16 %v278
    %v1084 = vunpack.c.h.b16 %v278
    %v1085 = vunpack.c.l.b16 %v279
    %v1086 = vunpack.c.h.b16 %v279
    %v1087 = vunpack.c.l.b16 %v280
    %v1088 = vunpack.c.h.b16 %v280
    %v1089 = vunpack.c.l.b16 %v281
    %v1090 = vunpack.c.h.b16 %v281
    %v1091 = vunpack.c.l.b16 %v282
    %v1092 = vunpack.c.h.b16 %v282
    %v1093 = vunpack.c.l.b16 %v283
    %v1094 = vunpack.c.h.b16 %v283
    %v1095 = vunpack.c.l.b16 %v284
    %v1096 = vunpack.c.h.b16 %v284
    %v1097 = vunpack.c.l.b16 %v285
    %v1098 = vunpack.c.h.b16 %v285
    %v1099 = vunpack.c.l.b16 %v286
    %v1100 = vunpack.c.h.b16 %v286
    %v1101 = vunpack.c.l.b16 %v287
    %v1102 = vunpack.c.h.b16 %v287
    %v1103 = vunpack.c.l.b16 %v288
    %v1104 = vunpack.c.h.b16 %v288
    %v1105 = vunpack.c.l.b16 %v289
    %v1106 = vunpack.c.h.b16 %v289
    %v1107 = vunpack.c.l.b16 %v290
    %v1108 = vunpack.c.h.b16 %v290
    %v1109 = vunpack.c.l.b16 %v291
    %v1110 = vunpack.c.h.b16 %v291
    %v1111 = vunpack.c.l.b16 %v292
    %v1112 = vunpack.c.h.b16 %v292
    %v1113 = vunpack.c.l.b16 %v293
    %v1114 = vunpack.c.h.b16 %v293
    %v1115 = vunpack.c.l.b16 %v294
    %v1116 = vunpack.c.h.b16 %v294
    %v1117 = vunpack.c.l.b16 %v295
    %v1118 = vunpack.c.h.b16 %v295
    %v1119 = vunpack.c.l.b16 %v296
    %v1120 = vunpack.c.h.b16 %v296
    %v1121 = vunpack.c.l.b16 %v297
    %v1122 = vunpack.c.h.b16 %v297
    %v1123 = vunpack.c.l.b16 %v298
    %v1124 = vunpack.c.h.b16 %v298
    %v1125 = vunpack.c.l.b16 %v299
    %v1126 = vunpack.c.h.b16 %v299
    %v1127 = vunpack.c.l.b16 %v300
    %v1128 = vunpack.c.h.b16 %v300
    %v1129 = vunpack.c.l.b16 %v301
    %v1130 = vunpack.c.h.b16 %v301
    %v1131 = vunpack.c.l.b16 %v302
    %v1132 = vunpack.c.h.b16 %v302
    %v1133 = vunpack.c.l.b16 %v303
    %v1134 = vunpack.c.h.b16 %v303
    %v1135 = vunpack.c.l.b16 %v304
    %v1136 = vunpack.c.h.b16 %v304
    %v1137 = vunpack.c.l.b16 %v305
    %v1138 = vunpack.c.h.b16 %v305
    %v1139 = vunpack.c.l.b16 %v306
    %v1140 = vunpack.c.h.b16 %v306
    %v1141 = vunpack.c.l.b16 %v307
    %v1142 = vunpack.c.h.b16 %v307
    %v1143 = vunpack.c.l.b16 %v308
    %v1144 = vunpack.c.h.b16 %v308
    %v1145 = vunpack.c.l.b16 %v309
    %v1146 = vunpack.c.h.b16 %v309
    %v1147 = vunpack.c.l.b16 %v310
    %v1148 = vunpack.c.h.b16 %v310
    %v1149 = vunpack.c.l.b16 %v311
    %v1150 = vunpack.c.h.b16 %v311
    %v1151 = vunpack.c.l.b16 %v312
    %v1152 = vunpack.c.h.b16 %v312
    %v1153 = vunpack.c.l.b16 %v313
    %v1154 = vunpack.c.h.b16 %v313
    %v1155 = vunpack.c.l.b16 %v314
    %v1156 = vunpack.c.h.b16 %v314
    %v1157 = vunpack.c.l.b16 %v315
    %v1158 = vunpack.c.h.b16 %v315
    %v1159 = vunpack.c.l.b16 %v316
    %v1160 = vunpack.c.h.b16 %v316
    %v1161 = vunpack.c.l.b16 %v317
    %v1162 = vunpack.c.h.b16 %v317
    %v1163 = vunpack.c.l.b16 %v318
    %v1164 = vunpack.c.h.b16 %v318
    %v1165 = vunpack.c.l.b16 %v319
    %v1166 = vunpack.c.h.b16 %v319
    %v1167 = vunpack.c.l.b16 %v320
    %v1168 = vunpack.c.h.b16 %v320
    %v1169 = vunpack.c.l.b16 %v321
    %v1170 = vunpack.c.h.b16 %v321
    %v1171 = vunpack.c.l.b16 %v322
    %v1172 = vunpack.c.h.b16 %v322
    %v1173 = vunpack.c.l.b16 %v323
    %v1174 = vunpack.c.h.b16 %v323
    %v1175 = vunpack.c.l.b16 %v324
    %v1176 = vunpack.c.h.b16 %v324
    %v1177 = vunpack.c.l.b16 %v325
    %v1178 = vunpack.c.h.b16 %v325
    %v1179 = vunpack.c.l.b16 %v326
    %v1180 = vunpack.c.h.b16 %v326
    %v1181 = vunpack.c.l.b16 %v327
    %v1182 = vunpack.c.h.b16 %v327
    %v1183 = vunpack.c.l.b16 %v328
    %v1184 = vunpack.c.h.b16 %v328
    %v1185 = vunpack.c.l.b16 %v329
    %v1186 = vunpack.c.h.b16 %v329
    %v1187 = vunpack.c.l.b16 %v330
    %v1188 = vunpack.c.h.b16 %v330
    %v1189 = vunpack.c.l.b16 %v331
    %v1190 = vunpack.c.h.b16 %v331
    %v1191 = vunpack.c.l.b16 %v332
    %v1192 = vunpack.c.h.b16 %v332
    %v1193 = vunpack.c.l.b16 %v333
    %v1194 = vunpack.c.h.b16 %v333
    %v1195 = vunpack.c.l.b16 %v334
    %v1196 = vunpack.c.h.b16 %v334
    %v1197 = vunpack.c.l.b16 %v335
    %v1198 = vunpack.c.h.b16 %v335
    %v1199 = vunpack.c.l.b16 %v336
    %v1200 = vunpack.c.h.b16 %v336
    %v1201 = vunpack.c.l.b16 %v337
    %v1202 = vunpack.c.h.b16 %v337
    %v1203 = vunpack.c.l.b16 %v338
    %v1204 = vunpack.c.h.b16 %v338
    %v1205 = vunpack.c.l.b16 %v339
    %v1206 = vunpack.c.h.b16 %v339
    %v1207 = vunpack.c.l.b16 %v340
    %v1208 = vunpack.c.h.b16 %v340
    %v1209 = vunpack.c.l.b16 %v341
    %v1210 = vunpack.c.h.b16 %v341
    %v1211 = vunpack.c.l.b16 %v342
    %v1212 = vunpack.c.h.b16 %v342
    %v1213 = vunpack.c.l.b16 %v343
    %v1214 = vunpack.c.h.b16 %v343
    %v1215 = vunpack.c.l.b16 %v344
    %v1216 = vunpack.c.h.b16 %v344
    %v1217 = vunpack.c.l.b16 %v345
    %v1218 = vunpack.c.h.b16 %v345
    %v1219 = vunpack.c.l.b16 %v346
    %v1220 = vunpack.c.h.b16 %v346
    %v1221 = vunpack.c.l.b16 %v347
    %v1222 = vunpack.c.h.b16 %v347
    %v1223 = vunpack.c.l.b16 %v348
    %v1224 = vunpack.c.h.b16 %v348
    %v1225 = vunpack.c.l.b16 %v349
    %v1226 = vunpack.c.h.b16 %v349
    %v1227 = vunpack.c.l.b16 %v350
    %v1228 = vunpack.c.h.b16 %v350
    %v1229 = vunpack.c.l.b16 %v351
    %v1230 = vunpack.c.h.b16 %v351
    %v1231 = vunpack.c.l.b16 %v352
    %v1232 = vunpack.c.h.b16 %v352
    %v1233 = vunpack.c.l.b16 %v353
    %v1234 = vunpack.c.h.b16 %v353
    %v1235 = vunpack.c.l.b16 %v354
    %v1236 = vunpack.c.h.b16 %v354
    %v1237 = vunpack.c.l.b16 %v355
    %v1238 = vunpack.c.h.b16 %v355
    %v1239 = vunpack.c.l.b16 %v356
    %v1240 = vunpack.c.h.b16 %v356
    %v1241 = vunpack.c.l.b16 %v357
    %v1242 = vunpack.c.h.b16 %v357
    %v1243 = vunpack.c.l.b16 %v358
    %v1244 = vunpack.c.h.b16 %v358
    %v1245 = vunpack.c.l.b16 %v359
    %v1246 = vunpack.c.h.b16 %v359
    %v1247 = vunpack.c.l.b16 %v360
    %v1248 = vunpack.c.h.b16 %v360
    %v1249 = vunpack.c.l.b16 %v361
    %v1250 = vunpack.c.h.b16 %v361
    %v1251 = vunpack.c.l.b16 %v362
    %v1252 = vunpack.c.h.b16 %v362
    %v1253 = vunpack.c.l.b16 %v363
    %v1254 = vunpack.c.h.b16 %v363
    %v1255 = vunpack.c.l.b16 %v364
    %v1256 = vunpack.c.h.b16 %v364
    %v1257 = vunpack.c.l.b16 %v365
    %v1258 = vunpack.c.h.b16 %v365
    %v1259 = vunpack.c.l.b16 %v366
    %v1260 = vunpack.c.h.b16 %v366
    %v1261 = vunpack.c.l.b16 %v367
    %v1262 = vunpack.c.h.b16 %v367
    %v1263 = vunpack.c.l.b16 %v368
    %v1264 = vunpack.c.h.b16 %v368
    %v1265 = vunpack.c.l.b16 %v369
    %v1266 = vunpack.c.h.b16 %v369
    %v1267 = vunpack.c.l.b16 %v370
    %v1268 = vunpack.c.h.b16 %v370
    %v1269 = vunpack.c.l.b16 %v371
    %v1270 = vunpack.c.h.b16 %v371
    %v1271 = vunpack.c.l.b16 %v372
    %v1272 = vunpack.c.h.b16 %v372
    %v1273 = vunpack.c.l.b16 %v373
    %v1274 = vunpack.c.h.b16 %v373
    %v1275 = vunpack.c.l.b16 %v374
    %v1276 = vunpack.c.h.b16 %v374
    %v1277 = vunpack.c.l.b16 %v375
    %v1278 = vunpack.c.h.b16 %v375
    %v1279 = vunpack.c.l.b16 %v376
    %v1280 = vunpack.c.h.b16 %v376
    %v1281 = vunpack.c.l.b16 %v377
    %v1282 = vunpack.c.h.b16 %v377
    %v1283 = vunpack.c.l.b16 %v378
    %v1284 = vunpack.c.h.b16 %v378
    %v1285 = vpack.c.b16 %v777, %v773
    %v1286 = vpack.c.b16 %v778, %v774
    %v1287 = vpack.c.b16 %v779, %v775
    %v1288 = vpack.c.b16 %v780, %v776
    %v1289 = vpack.c.b16 %v785, %v781
    %v1290 = vpack.c.b16 %v786, %v782
    %v1291 = vpack.c.b16 %v787, %v783
    %v1292 = vpack.c.b16 %v788, %v784
    %v1293 = vpack.c.b16 %v793, %v789
    %v1294 = vpack.c.b16 %v794, %v790
    %v1295 = vpack.c.b16 %v795, %v791
    %v1296 = vpack.c.b16 %v796, %v792
    %v1297 = vpack.c.b16 %v801, %v797
    %v1298 = vpack.c.b16 %v802, %v798
    %v1299 = vpack.c.b16 %v803, %v799
    %v1300 = vpack.c.b16 %v804, %v800
    %v1301 = vpack.c.b16 %v809, %v805
    %v1302 = vpack.c.b16 %v810, %v806
    %v1303 = vpack.c.b16 %v811, %v807
    %v1304 = vpack.c.b16 %v812, %v808
    %v1305 = vpack.c.b16 %v817, %v813
    %v1306 = vpack.c.b16 %v818, %v814
    %v1307 = vpack.c.b16 %v819, %v815
    %v1308 = vpack.c.b16 %v820, %v816
    %v1309 = vpack.c.b16 %v825, %v821
    %v1310 = vpack.c.b16 %v826, %v822
    %v1311 = vpack.c.b16 %v827, %v823
    %v1312 = vpack.c.b16 %v828, %v824
    %v1313 = vpack.c.b16 %v833, %v829
    %v1314 = vpack.c.b16 %v834, %v830
    %v1315 = vpack.c.b16 %v835, %v831
    %v1316 = vpack.c.b16 %v836, %v832
    %v1317 = vpack.c.b16 %v841, %v837
    %v1318 = vpack.c.b16 %v842, %v838
    %v1319 = vpack.c.b16 %v843, %v839
    %v1320 = vpack.c.b16 %v844, %v840
    %v1321 = vpack.c.b16 %v849, %v845
    %v1322 = vpack.c.b16 %v850, %v846
    %v1323 = vpack.c.b16 %v851, %v847
    %v1324 = vpack.c.b16 %v852, %v848
    %v1325 = vpack.c.b16 %v857, %v853
    %v1326 = vpack.c.b16 %v858, %v854
    %v1327 = vpack.c.b16 %v859, %v855
    %v1328 = vpack.c.b16 %v860, %v856
    %v1329 = vpack.c.b16 %v865, %v861
    %v1330 = vpack.c.b16 %v866, %v862
    %v1331 = vpack.c.b16 %v867, %v863
    %v1332 = vpack.c.b16 %v868, %v864
    %v1333 = vpack.c.b16 %v873, %v869
    %v1334 = vpack.c.b16 %v874, %v870
    %v1335 = vpack.c.b16 %v875, %v871
    %v1336 = vpack.c.b16 %v876, %v872
    %v1337 = vpack.c.b16 %v881, %v877
    %v1338 = vpack.c.b16 %v882, %v878
    %v1339 = vpack.c.b16 %v883, %v879
    %v1340 = vpack.c.b16 %v884, %v880
    %v1341 = vpack.c.b16 %v889, %v885
    %v1342 = vpack.c.b16 %v890, %v886
    %v1343 = vpack.c.b16 %v891, %v887
    %v1344 = vpack.c.b16 %v892, %v888
    %v1345 = vpack.c.b16 %v897, %v893
    %v1346 = vpack.c.b16 %v898, %v894
    %v1347 = vpack.c.b16 %v899, %v895
    %v1348 = vpack.c.b16 %v900, %v896
    %v1349 = vpack.c.b16 %v905, %v901
    %v1350 = vpack.c.b16 %v906, %v902
    %v1351 = vpack.c.b16 %v907, %v903
    %v1352 = vpack.c.b16 %v908, %v904
    %v1353 = vpack.c.b16 %v913, %v909
    %v1354 = vpack.c.b16 %v914, %v910
    %v1355 = vpack.c.b16 %v915, %v911
    %v1356 = vpack.c.b16 %v916, %v912
    %v1357 = vpack.c.b16 %v921, %v917
    %v1358 = vpack.c.b16 %v922, %v918
    %v1359 = vpack.c.b16 %v923, %v919
    %v1360 = vpack.c.b16 %v924, %v920
    %v1361 = vpack.c.b16 %v929, %v925
    %v1362 = vpack.c.b16 %v930, %v926
    %v1363 = vpack.c.b16 %v931, %v927
    %v1364 = vpack.c.b16 %v932, %v928
    %v1365 = vpack.c.b16 %v937, %v933
    %v1366 = vpack.c.b16 %v938, %v934
    %v1367 = vpack.c.b16 %v939, %v935
    %v1368 = vpack.c.b16 %v940, %v936
    %v1369 = vpack.c.b16 %v945, %v941
    %v1370 = vpack.c.b16 %v946, %v942
    %v1371 = vpack.c.b16 %v947, %v943
    %v1372 = vpack.c.b16 %v948, %v944
    %v1373 = vpack.c.b16 %v953, %v949
    %v1374 = vpack.c.b16 %v954, %v950
    %v1375 = vpack.c.b16 %v955, %v951
    %v1376 = vpack.c.b16 %v956, %v952
    %v1377 = vpack.c.b16 %v961, %v957
    %v1378 = vpack.c.b16 %v962, %v958
    %v1379 = vpack.c.b16 %v963, %v959
    %v1380 = vpack.c.b16 %v964, %v960
    %v1381 = vpack.c.b16 %v969, %v965
    %v1382 = vpack.c.b16 %v970, %v966
    %v1383 = vpack.c.b16 %v971, %v967
    %v1384 = vpack.c.b16 %v972, %v968
    %v1385 = vpack.c.b16 %v977, %v973
    %v1386 = vpack.c.b16 %v978, %v974
    %v1387 = vpack.c.b16 %v979, %v975
    %v1388 = vpack.c.b16 %v980, %v976
    %v1389 = vpack.c.b16 %v985, %v981
    %v1390 = vpack.c.b16 %v986, %v982
    %v1391 = vpack.c.b16 %v987, %v983
    %v1392 = vpack.c.b16 %v988, %v984
    %v1393 = vpack.c.b16 %v993, %v989
    %v1394 = vpack.c.b16 %v994, %v990
    %v1395 = vpack.c.b16 %v995, %v991
    %v1396 = vpack.c.b16 %v996, %v992
    %v1397 = vpack.c.b16 %v1001, %v997
    %v1398 = vpack.c.b16 %v1002, %v998
    %v1399 = vpack.c.b16 %v1003, %v999
    %v1400 = vpack.c.b16 %v1004, %v1000
    %v1401 = vpack.c.b16 %v1009, %v1005
    %v1402 = vpack.c.b16 %v1010, %v1006
    %v1403 = vpack.c.b16 %v1011, %v1007
    %v1404 = vpack.c.b16 %v1012, %v1008
    %v1405 = vpack.c.b16 %v1017, %v1013
    %v1406 = vpack.c.b16 %v1018, %v1014
    %v1407 = vpack.c.b16 %v1019, %v1015
    %v1408 = vpack.c.b16 %v1020, %v1016
    %v1409 = vpack.c.b16 %v1025, %v1021
    %v1410 = vpack.c.b16 %v1026, %v1022
    %v1411 = vpack.c.b16 %v1027, %v1023
    %v1412 = vpack.c.b16 %v1028, %v1024
    %v1413 = vpack.c.b16 %v1033, %v1029
    %v1414 = vpack.c.b16 %v1034, %v1030
    %v1415 = vpack.c.b16 %v1035, %v1031
    %v1416 = vpack.c.b16 %v1036, %v1032
    %v1417 = vpack.c.b16 %v1041, %v1037
    %v1418 = vpack.c.b16 %v1042, %v1038
    %v1419 = vpack.c.b16 %v1043, %v1039
    %v1420 = vpack.c.b16 %v1044, %v1040
    %v1421 = vpack.c.b16 %v1049, %v1045
    %v1422 = vpack.c.b16 %v1050, %v1046
    %v1423 = vpack.c.b16 %v1051, %v1047
    %v1424 = vpack.c.b16 %v1052, %v1048
    %v1425 = vpack.c.b16 %v1057, %v1053
    %v1426 = vpack.c.b16 %v1058, %v1054
    %v1427 = vpack.c.b16 %v1059, %v1055
    %v1428 = vpack.c.b16 %v1060, %v1056
    %v1429 = vpack.c.b16 %v1065, %v1061
    %v1430 = vpack.c.b16 %v1066, %v1062
    %v1431 = vpack.c.b16 %v1067, %v1063
    %v1432 = vpack.c.b16 %v1068, %v1064
    %v1433 = vpack.c.b16 %v1073, %v1069
    %v1434 = vpack.c.b16 %v1074, %v1070
    %v1435 = vpack.c.b16 %v1075, %v1071
    %v1436 = vpack.c.b16 %v1076, %v1072
    %v1437 = vpack.c.b16 %v1081, %v1077
    %v1438 = vpack.c.b16 %v1082, %v1078
    %v1439 = vpack.c.b16 %v1083, %v1079
    %v1440 = vpack.c.b16 %v1084, %v1080
    %v1441 = vpack.c.b16 %v1089, %v1085
    %v1442 = vpack.c.b16 %v1090, %v1086
    %v1443 = vpack.c.b16 %v1091, %v1087
    %v1444 = vpack.c.b16 %v1092, %v1088
    %v1445 = vpack.c.b16 %v1097, %v1093
    %v1446 = vpack.c.b16 %v1098, %v1094
    %v1447 = vpack.c.b16 %v1099, %v1095
    %v1448 = vpack.c.b16 %v1100, %v1096
    %v1449 = vpack.c.b16 %v1105, %v1101
    %v1450 = vpack.c.b16 %v1106, %v1102
    %v1451 = vpack.c.b16 %v1107, %v1103
    %v1452 = vpack.c.b16 %v1108, %v1104
    %v1453 = vpack.c.b16 %v1113, %v1109
    %v1454 = vpack.c.b16 %v1114, %v1110
    %v1455 = vpack.c.b16 %v1115, %v1111
    %v1456 = vpack.c.b16 %v1116, %v1112
    %v1457 = vpack.c.b16 %v1121, %v1117
    %v1458 = vpack.c.b16 %v1122, %v1118
    %v1459 = vpack.c.b16 %v1123, %v1119
    %v1460 = vpack.c.b16 %v1124, %v1120
    %v1461 = vpack.c.b16 %v1129, %v1125
    %v1462 = vpack.c.b16 %v1130, %v1126
    %v1463 = vpack.c.b16 %v1131, %v1127
    %v1464 = vpack.c.b16 %v1132, %v1128
    %v1465 = vpack.c.b16 %v1137, %v1133
    %v1466 = vpack.c.b16 %v1138, %v1134
    %v1467 = vpack.c.b16 %v1139, %v1135
    %v1468 = vpack.c.b16 %v1140, %v1136
    %v1469 = vpack.c.b16 %v1145, %v1141
    %v1470 = vpack.c.b16 %v1146, %v1142
    %v1471 = vpack.c.b16 %v1147, %v1143
    %v1472 = vpack.c.b16 %v1148, %v1144
    %v1473 = vpack.c.b16 %v1153, %v1149
    %v1474 = vpack.c.b16 %v1154, %v1150
    %v1475 = vpack.c.b16 %v1155, %v1151
    %v1476 = vpack.c.b16 %v1156, %v1152
    %v1477 = vpack.c.b16 %v1161, %v1157
    %v1478 = vpack.c.b16 %v1162, %v1158
    %v1479 = vpack.c.b16 %v1163, %v1159
    %v1480 = vpack.c.b16 %v1164, %v1160
    %v1481 = vpack.c.b16 %v1169, %v1165
    %v1482 = vpack.c.b16 %v1170, %v1166
    %v1483 = vpack.c.b16 %v1171, %v1167
    %v1484 = vpack.c.b16 %v1172, %v1168
    %v1485 = vpack.c.b16 %v1177, %v1173
    %v1486 = vpack.c.b16 %v1178, %v1174
    %v1487 = vpack.c.b16 %v1179, %v1175
    %v1488 = vpack.c.b16 %v1180, %v1176
    %v1489 = vpack.c.b16 %v1185, %v1181
    %v1490 = vpack.c.b16 %v1186, %v1182
    %v1491 = vpack.c.b16 %v1187, %v1183
    %v1492 = vpack.c.b16 %v1188, %v1184
    %v1493 = vpack.c.b16 %v1193, %v1189
    %v1494 = vpack.c.b16 %v1194, %v1190
    %v1495 = vpack.c.b16 %v1195, %v1191
    %v1496 = vpack.c.b16 %v1196, %v1192
    %v1497 = vpack.c.b16 %v1201, %v1197
    %v1498 = vpack.c.b16 %v1202, %v1198
    %v1499 = vpack.c.b16 %v1203, %v1199
    %v1500 = vpack.c.b16 %v1204, %v1200
    %v1501 = vpack.c.b16 %v1209, %v1205
    %v1502 = vpack.c.b16 %v1210, %v1206
    %v1503 = vpack.c.b16 %v1211, %v1207
    %v1504 = vpack.c.b16 %v1212, %v1208
    %v1505 = vpack.c.b16 %v1217, %v1213
    %v1506 = vpack.c.b16 %v1218, %v1214
    %v1507 = vpack.c.b16 %v1219, %v1215
    %v1508 = vpack.c.b16 %v1220, %v1216
    %v1509 = vpack.c.b16 %v1225, %v1221
    %v1510 = vpack.c.b16 %v1226, %v1222
    %v1511 = vpack.c.b16 %v1227, %v1223
    %v1512 = vpack.c.b16 %v1228, %v1224
    %v1513 = vpack.c.b16 %v1233, %v1229
    %v1514 = vpack.c.b16 %v1234, %v1230
    %v1515 = vpack.c.b16 %v1235, %v1231
    %v1516 = vpack.c.b16 %v1236, %v1232
    %v1517 = vpack.c.b16 %v1241, %v1237
    %v1518 = vpack.c.b16 %v1242, %v1238
    %v1519 = vpack.c.b16 %v1243, %v1239
    %v1520 = vpack.c.b16 %v1244, %v1240
    %v1521 = vpack.c.b16 %v1249, %v1245
    %v1522 = vpack.c.b16 %v1250, %v1246
    %v1523 = vpack.c.b16 %v1251, %v1247
    %v1524 = vpack.c.b16 %v1252, %v1248
    %v1525 = vpack.c.b16 %v1257, %v1253
    %v1526 = vpack.c.b16 %v1258, %v1254
    %v1527 = vpack.c.b16 %v1259, %v1255
    %v1528 = vpack.c.b16 %v1260, %v1256
    %v1529 = vpack.c.b16 %v1265, %v1261
    %v1530 = vpack.c.b16 %v1266, %v1262
    %v1531 = vpack.c.b16 %v1267, %v1263
    %v1532 = vpack.c.b16 %v1268, %v1264
    %v1533 = vpack.c.b16 %v1273, %v1269
    %v1534 = vpack.c.b16 %v1274, %v1270
    %v1535 = vpack.c.b16 %v1275, %v1271
    %v1536 = vpack.c.b16 %v1276, %v1272
    %v1537 = vpack.c.b16 %v1281, %v1277
    %v1538 = vpack.c.b16 %v1282, %v1278
    %v1539 = vpack.c.b16 %v1283, %v1279
    %v1540 = vpack.c.b16 %v1284, %v1280
    %1797 = vmatprep.subr.bf16.mxu0 %v1314
    %1798 = vmatpush1.bf16.msra.mxu0 %v1313
    %1799 = vmatprep.subr.bf16.mxu0 %v1310
    %1800 = vmatpush1.bf16.msra.mxu0 %v1309
    %1801 = vmatprep.subr.bf16.mxu0 %v1306
    %1802 = vmatpush1.bf16.msra.mxu0 %v1305
    %1803 = vmatprep.subr.bf16.mxu0 %v1302
    %1804 = vmatpush1.bf16.msra.mxu0 %v1301
    %1805 = vmatprep.subr.bf16.mxu0 %v1298
    %1806 = vmatpush1.bf16.msra.mxu0 %v1297
    %1807 = vmatprep.subr.bf16.mxu0 %v1294
    %1808 = vmatpush1.bf16.msra.mxu0 %v1293
    %1809 = vmatprep.subr.bf16.mxu0 %v1290
    %1810 = vmatpush1.bf16.msra.mxu0 %v1289
    %1811 = vmatprep.subr.bf16.mxu0 %v1286
    %1812 = vmatpush1.bf16.msra.mxu0 %v1285
    %1813 = vmatprep.subr.bf16.mxu0 %v1346
    %1814 = vmatpush2.bf16.msra.mxu0 %v1345
    %1815 = vmatprep.subr.bf16.mxu0 %v1342
    %1816 = vmatpush2.bf16.msra.mxu0 %v1341
    %1817 = vmatprep.subr.bf16.mxu0 %v1338
    %1818 = vmatpush2.bf16.msra.mxu0 %v1337
    %1819 = vmatprep.subr.bf16.mxu0 %v1334
    %1820 = vmatpush2.bf16.msra.mxu0 %v1333
    %1821 = vmatprep.subr.bf16.mxu0 %v1330
    %1822 = vmatpush2.bf16.msra.mxu0 %v1329
    %1823 = vmatprep.subr.bf16.mxu0 %v1326
    %1824 = vmatpush2.bf16.msra.mxu0 %v1325
    %1825 = vmatprep.subr.bf16.mxu0 %v1322
    %1826 = vmatpush2.bf16.msra.mxu0 %v1321
    %1827 = vmatprep.subr.bf16.mxu0 %v1318
    %1828 = vmatpush2.bf16.msra.mxu0 %v1317
    %1829 = vmatprep.mubr.bf16.mxu0 %v113
    %1830 = vmatmul.mubr.bf16.gmra.mxu0 %v112
    %v1831 = vpop.f32.mrf.mxu0
    %v1832 = vadd.f32 %v466, %v1831
    %v1833 = vpop.f32.mrf.mxu0
    %v1834 = vadd.f32 %v468, %v1833
    %v1835 = vpop.f32.mrf.mxu0
    %v1836 = vadd.f32 %v470, %v1835
    %v1837 = vpop.f32.mrf.mxu0
    %v1838 = vadd.f32 %v472, %v1837
    %1839 = vdwg.mxu0
    %1840 = vmatprep.subr.bf16.mxu0 %v1378
    %1841 = vmatpush1.bf16.msra.mxu0 %v1377
    %1842 = vmatprep.subr.bf16.mxu0 %v1374
    %1843 = vmatpush1.bf16.msra.mxu0 %v1373
    %1844 = vmatprep.subr.bf16.mxu0 %v1370
    %1845 = vmatpush1.bf16.msra.mxu0 %v1369
    %1846 = vmatprep.subr.bf16.mxu0 %v1366
    %1847 = vmatpush1.bf16.msra.mxu0 %v1365
    %1848 = vmatprep.subr.bf16.mxu0 %v1362
    %1849 = vmatpush1.bf16.msra.mxu0 %v1361
    %1850 = vmatprep.subr.bf16.mxu0 %v1358
    %1851 = vmatpush1.bf16.msra.mxu0 %v1357
    %1852 = vmatprep.subr.bf16.mxu0 %v1354
    %1853 = vmatpush1.bf16.msra.mxu0 %v1353
    %1854 = vmatprep.subr.bf16.mxu0 %v1350
    %1855 = vmatpush1.bf16.msra.mxu0 %v1349
    %1856 = vmatprep.subr.bf16.mxu0 %v1410
    %1857 = vmatpush2.bf16.msra.mxu0 %v1409
    %1858 = vmatprep.subr.bf16.mxu0 %v1406
    %1859 = vmatpush2.bf16.msra.mxu0 %v1405
    %1860 = vmatprep.subr.bf16.mxu0 %v1402
    %1861 = vmatpush2.bf16.msra.mxu0 %v1401
    %1862 = vmatprep.subr.bf16.mxu0 %v1398
    %1863 = vmatpush2.bf16.msra.mxu0 %v1397
    %1864 = vmatprep.subr.bf16.mxu0 %v1394
    %1865 = vmatpush2.bf16.msra.mxu0 %v1393
    %1866 = vmatprep.subr.bf16.mxu0 %v1390
    %1867 = vmatpush2.bf16.msra.mxu0 %v1389
    %1868 = vmatprep.subr.bf16.mxu0 %v1386
    %1869 = vmatpush2.bf16.msra.mxu0 %v1385
    %1870 = vmatprep.subr.bf16.mxu0 %v1382
    %1871 = vmatpush2.bf16.msra.mxu0 %v1381
    %1872 = vmatprep.mubr.bf16.mxu0 %v115
    %1873 = vmatmul.mubr.bf16.gmra.mxu0 %v114
    %v1874 = vpop.f32.mrf.mxu0
    %v1875 = vadd.f32 %v1832, %v1874
    %v1876 = vpop.f32.mrf.mxu0
    %v1877 = vadd.f32 %v1834, %v1876
    %v1878 = vpop.f32.mrf.mxu0
    %v1879 = vadd.f32 %v1836, %v1878
    %v1880 = vpop.f32.mrf.mxu0
    %v1881 = vadd.f32 %v1838, %v1880
    %1882 = vdwg.mxu0
    %1883 = vmatprep.subr.bf16.mxu0 %v1442
    %1884 = vmatpush1.bf16.msra.mxu0 %v1441
    %1885 = vmatprep.subr.bf16.mxu0 %v1438
    %1886 = vmatpush1.bf16.msra.mxu0 %v1437
    %1887 = vmatprep.subr.bf16.mxu0 %v1434
    %1888 = vmatpush1.bf16.msra.mxu0 %v1433
    %1889 = vmatprep.subr.bf16.mxu0 %v1430
    %1890 = vmatpush1.bf16.msra.mxu0 %v1429
    %1891 = vmatprep.subr.bf16.mxu0 %v1426
    %1892 = vmatpush1.bf16.msra.mxu0 %v1425
    %1893 = vmatprep.subr.bf16.mxu0 %v1422
    %1894 = vmatpush1.bf16.msra.mxu0 %v1421
    %1895 = vmatprep.subr.bf16.mxu0 %v1418
    %1896 = vmatpush1.bf16.msra.mxu0 %v1417
    %1897 = vmatprep.subr.bf16.mxu0 %v1414
    %1898 = vmatpush1.bf16.msra.mxu0 %v1413
    %1899 = vmatprep.subr.bf16.mxu0 %v1474
    %1900 = vmatpush2.bf16.msra.mxu0 %v1473
    %1901 = vmatprep.subr.bf16.mxu0 %v1470
    %1902 = vmatpush2.bf16.msra.mxu0 %v1469
    %1903 = vmatprep.subr.bf16.mxu0 %v1466
    %1904 = vmatpush2.bf16.msra.mxu0 %v1465
    %1905 = vmatprep.subr.bf16.mxu0 %v1462
    %1906 = vmatpush2.bf16.msra.mxu0 %v1461
    %1907 = vmatprep.subr.bf16.mxu0 %v1458
    %1908 = vmatpush2.bf16.msra.mxu0 %v1457
    %1909 = vmatprep.subr.bf16.mxu0 %v1454
    %1910 = vmatpush2.bf16.msra.mxu0 %v1453
    %1911 = vmatprep.subr.bf16.mxu0 %v1450
    %1912 = vmatpush2.bf16.msra.mxu0 %v1449
    %1913 = vmatprep.subr.bf16.mxu0 %v1446
    %1914 = vmatpush2.bf16.msra.mxu0 %v1445
    %1915 = vmatprep.mubr.bf16.mxu0 %v117
    %1916 = vmatmul.mubr.bf16.gmra.mxu0 %v116
    %v1917 = vpop.f32.mrf.mxu0
    %v1918 = vadd.f32 %v1875, %v1917
    %v1919 = vpop.f32.mrf.mxu0
    %v1920 = vadd.f32 %v1877, %v1919
    %v1921 = vpop.f32.mrf.mxu0
    %v1922 = vadd.f32 %v1879, %v1921
    %v1923 = vpop.f32.mrf.mxu0
    %v1924 = vadd.f32 %v1881, %v1923
    %1925 = vdwg.mxu0
    %1926 = vmatprep.subr.bf16.mxu0 %v1506
    %1927 = vmatpush1.bf16.msra.mxu0 %v1505
    %1928 = vmatprep.subr.bf16.mxu0 %v1502
    %1929 = vmatpush1.bf16.msra.mxu0 %v1501
    %1930 = vmatprep.subr.bf16.mxu0 %v1498
    %1931 = vmatpush1.bf16.msra.mxu0 %v1497
    %1932 = vmatprep.subr.bf16.mxu0 %v1494
    %1933 = vmatpush1.bf16.msra.mxu0 %v1493
    %1934 = vmatprep.subr.bf16.mxu0 %v1490
    %1935 = vmatpush1.bf16.msra.mxu0 %v1489
    %1936 = vmatprep.subr.bf16.mxu0 %v1486
    %1937 = vmatpush1.bf16.msra.mxu0 %v1485
    %1938 = vmatprep.subr.bf16.mxu0 %v1482
    %1939 = vmatpush1.bf16.msra.mxu0 %v1481
    %1940 = vmatprep.subr.bf16.mxu0 %v1478
    %1941 = vmatpush1.bf16.msra.mxu0 %v1477
    %1942 = vmatprep.subr.bf16.mxu0 %v1538
    %1943 = vmatpush2.bf16.msra.mxu0 %v1537
    %1944 = vmatprep.subr.bf16.mxu0 %v1534
    %1945 = vmatpush2.bf16.msra.mxu0 %v1533
    %1946 = vmatprep.subr.bf16.mxu0 %v1530
    %1947 = vmatpush2.bf16.msra.mxu0 %v1529
    %1948 = vmatprep.subr.bf16.mxu0 %v1526
    %1949 = vmatpush2.bf16.msra.mxu0 %v1525
    %1950 = vmatprep.subr.bf16.mxu0 %v1522
    %1951 = vmatpush2.bf16.msra.mxu0 %v1521
    %1952 = vmatprep.subr.bf16.mxu0 %v1518
    %1953 = vmatpush2.bf16.msra.mxu0 %v1517
    %1954 = vmatprep.subr.bf16.mxu0 %v1514
    %1955 = vmatpush2.bf16.msra.mxu0 %v1513
    %1956 = vmatprep.subr.bf16.mxu0 %v1510
    %1957 = vmatpush2.bf16.msra.mxu0 %v1509
    %1958 = vmatprep.mubr.bf16.mxu0 %v119
    %1959 = vmatmul.mubr.bf16.gmra.mxu0 %v118
    %v1960 = vpop.f32.mrf.mxu0
    %v1961 = vadd.f32 %v1918, %v1960
    %v1962 = vpop.f32.mrf.mxu0
    %v1963 = vadd.f32 %v1920, %v1962
    %v1964 = vpop.f32.mrf.mxu0
    %v1965 = vadd.f32 %v1922, %v1964
    %v1966 = vpop.f32.mrf.mxu0
    %v1967 = vadd.f32 %v1924, %v1966
    %1968 = vdwg.mxu0
    %1969 = vmatprep.subr.bf16.mxu0 %v1316
    %1970 = vmatpush1.bf16.msra.mxu0 %v1315
    %1971 = vmatprep.subr.bf16.mxu0 %v1312
    %1972 = vmatpush1.bf16.msra.mxu0 %v1311
    %1973 = vmatprep.subr.bf16.mxu0 %v1308
    %1974 = vmatpush1.bf16.msra.mxu0 %v1307
    %1975 = vmatprep.subr.bf16.mxu0 %v1304
    %1976 = vmatpush1.bf16.msra.mxu0 %v1303
    %1977 = vmatprep.subr.bf16.mxu0 %v1300
    %1978 = vmatpush1.bf16.msra.mxu0 %v1299
    %1979 = vmatprep.subr.bf16.mxu0 %v1296
    %1980 = vmatpush1.bf16.msra.mxu0 %v1295
    %1981 = vmatprep.subr.bf16.mxu0 %v1292
    %1982 = vmatpush1.bf16.msra.mxu0 %v1291
    %1983 = vmatprep.subr.bf16.mxu0 %v1288
    %1984 = vmatpush1.bf16.msra.mxu0 %v1287
    %1985 = vmatprep.subr.bf16.mxu0 %v1348
    %1986 = vmatpush2.bf16.msra.mxu0 %v1347
    %1987 = vmatprep.subr.bf16.mxu0 %v1344
    %1988 = vmatpush2.bf16.msra.mxu0 %v1343
    %1989 = vmatprep.subr.bf16.mxu0 %v1340
    %1990 = vmatpush2.bf16.msra.mxu0 %v1339
    %1991 = vmatprep.subr.bf16.mxu0 %v1336
    %1992 = vmatpush2.bf16.msra.mxu0 %v1335
    %1993 = vmatprep.subr.bf16.mxu0 %v1332
    %1994 = vmatpush2.bf16.msra.mxu0 %v1331
    %1995 = vmatprep.subr.bf16.mxu0 %v1328
    %1996 = vmatpush2.bf16.msra.mxu0 %v1327
    %1997 = vmatprep.subr.bf16.mxu0 %v1324
    %1998 = vmatpush2.bf16.msra.mxu0 %v1323
    %1999 = vmatprep.subr.bf16.mxu0 %v1320
    %2000 = vmatpush2.bf16.msra.mxu0 %v1319
    %2001 = vmatprep.mubr.bf16.mxu0 %v113
    %2002 = vmatmul.mubr.bf16.gmra.mxu0 %v112
    %v2003 = vpop.f32.mrf.mxu0
    %v2004 = vadd.f32 %v509, %v2003
    %v2005 = vpop.f32.mrf.mxu0
    %v2006 = vadd.f32 %v511, %v2005
    %v2007 = vpop.f32.mrf.mxu0
    %v2008 = vadd.f32 %v513, %v2007
    %v2009 = vpop.f32.mrf.mxu0
    %v2010 = vadd.f32 %v515, %v2009
    %2011 = vdwg.mxu0
    %2012 = vmatprep.subr.bf16.mxu0 %v1380
    %2013 = vmatpush1.bf16.msra.mxu0 %v1379
    %2014 = vmatprep.subr.bf16.mxu0 %v1376
    %2015 = vmatpush1.bf16.msra.mxu0 %v1375
    %2016 = vmatprep.subr.bf16.mxu0 %v1372
    %2017 = vmatpush1.bf16.msra.mxu0 %v1371
    %2018 = vmatprep.subr.bf16.mxu0 %v1368
    %2019 = vmatpush1.bf16.msra.mxu0 %v1367
    %2020 = vmatprep.subr.bf16.mxu0 %v1364
    %2021 = vmatpush1.bf16.msra.mxu0 %v1363
    %2022 = vmatprep.subr.bf16.mxu0 %v1360
    %2023 = vmatpush1.bf16.msra.mxu0 %v1359
    %2024 = vmatprep.subr.bf16.mxu0 %v1356
    %2025 = vmatpush1.bf16.msra.mxu0 %v1355
    %2026 = vmatprep.subr.bf16.mxu0 %v1352
    %2027 = vmatpush1.bf16.msra.mxu0 %v1351
    %2028 = vmatprep.subr.bf16.mxu0 %v1412
    %2029 = vmatpush2.bf16.msra.mxu0 %v1411
    %2030 = vmatprep.subr.bf16.mxu0 %v1408
    %2031 = vmatpush2.bf16.msra.mxu0 %v1407
    %2032 = vmatprep.subr.bf16.mxu0 %v1404
    %2033 = vmatpush2.bf16.msra.mxu0 %v1403
    %2034 = vmatprep.subr.bf16.mxu0 %v1400
    %2035 = vmatpush2.bf16.msra.mxu0 %v1399
    %2036 = vmatprep.subr.bf16.mxu0 %v1396
    %2037 = vmatpush2.bf16.msra.mxu0 %v1395
    %2038 = vmatprep.subr.bf16.mxu0 %v1392
    %2039 = vmatpush2.bf16.msra.mxu0 %v1391
    %2040 = vmatprep.subr.bf16.mxu0 %v1388
    %2041 = vmatpush2.bf16.msra.mxu0 %v1387
    %2042 = vmatprep.subr.bf16.mxu0 %v1384
    %2043 = vmatpush2.bf16.msra.mxu0 %v1383
    %2044 = vmatprep.mubr.bf16.mxu0 %v115
    %2045 = vmatmul.mubr.bf16.gmra.mxu0 %v114
    %v2046 = vpop.f32.mrf.mxu0
    %v2047 = vadd.f32 %v2004, %v2046
    %v2048 = vpop.f32.mrf.mxu0
    %v2049 = vadd.f32 %v2006, %v2048
    %v2050 = vpop.f32.mrf.mxu0
    %v2051 = vadd.f32 %v2008, %v2050
    %v2052 = vpop.f32.mrf.mxu0
    %v2053 = vadd.f32 %v2010, %v2052
    %2054 = vdwg.mxu0
    %2055 = vmatprep.subr.bf16.mxu0 %v1444
    %2056 = vmatpush1.bf16.msra.mxu0 %v1443
    %2057 = vmatprep.subr.bf16.mxu0 %v1440
    %2058 = vmatpush1.bf16.msra.mxu0 %v1439
    %2059 = vmatprep.subr.bf16.mxu0 %v1436
    %2060 = vmatpush1.bf16.msra.mxu0 %v1435
    %2061 = vmatprep.subr.bf16.mxu0 %v1432
    %2062 = vmatpush1.bf16.msra.mxu0 %v1431
    %2063 = vmatprep.subr.bf16.mxu0 %v1428
    %2064 = vmatpush1.bf16.msra.mxu0 %v1427
    %2065 = vmatprep.subr.bf16.mxu0 %v1424
    %2066 = vmatpush1.bf16.msra.mxu0 %v1423
    %2067 = vmatprep.subr.bf16.mxu0 %v1420
    %2068 = vmatpush1.bf16.msra.mxu0 %v1419
    %2069 = vmatprep.subr.bf16.mxu0 %v1416
    %2070 = vmatpush1.bf16.msra.mxu0 %v1415
    %2071 = vmatprep.subr.bf16.mxu0 %v1476
    %2072 = vmatpush2.bf16.msra.mxu0 %v1475
    %2073 = vmatprep.subr.bf16.mxu0 %v1472
    %2074 = vmatpush2.bf16.msra.mxu0 %v1471
    %2075 = vmatprep.subr.bf16.mxu0 %v1468
    %2076 = vmatpush2.bf16.msra.mxu0 %v1467
    %2077 = vmatprep.subr.bf16.mxu0 %v1464
    %2078 = vmatpush2.bf16.msra.mxu0 %v1463
    %2079 = vmatprep.subr.bf16.mxu0 %v1460
    %2080 = vmatpush2.bf16.msra.mxu0 %v1459
    %2081 = vmatprep.subr.bf16.mxu0 %v1456
    %2082 = vmatpush2.bf16.msra.mxu0 %v1455
    %2083 = vmatprep.subr.bf16.mxu0 %v1452
    %2084 = vmatpush2.bf16.msra.mxu0 %v1451
    %2085 = vmatprep.subr.bf16.mxu0 %v1448
    %2086 = vmatpush2.bf16.msra.mxu0 %v1447
    %2087 = vmatprep.mubr.bf16.mxu0 %v117
    %2088 = vmatmul.mubr.bf16.gmra.mxu0 %v116
    %v2089 = vpop.f32.mrf.mxu0
    %v2090 = vadd.f32 %v2047, %v2089
    %v2091 = vpop.f32.mrf.mxu0
    %v2092 = vadd.f32 %v2049, %v2091
    %v2093 = vpop.f32.mrf.mxu0
    %v2094 = vadd.f32 %v2051, %v2093
    %v2095 = vpop.f32.mrf.mxu0
    %v2096 = vadd.f32 %v2053, %v2095
    %2097 = vdwg.mxu0
    %2098 = vmatprep.subr.bf16.mxu0 %v1508
    %2099 = vmatpush1.bf16.msra.mxu0 %v1507
    %2100 = vmatprep.subr.bf16.mxu0 %v1504
    %2101 = vmatpush1.bf16.msra.mxu0 %v1503
    %2102 = vmatprep.subr.bf16.mxu0 %v1500
    %2103 = vmatpush1.bf16.msra.mxu0 %v1499
    %2104 = vmatprep.subr.bf16.mxu0 %v1496
    %2105 = vmatpush1.bf16.msra.mxu0 %v1495
    %2106 = vmatprep.subr.bf16.mxu0 %v1492
    %2107 = vmatpush1.bf16.msra.mxu0 %v1491
    %2108 = vmatprep.subr.bf16.mxu0 %v1488
    %2109 = vmatpush1.bf16.msra.mxu0 %v1487
    %2110 = vmatprep.subr.bf16.mxu0 %v1484
    %2111 = vmatpush1.bf16.msra.mxu0 %v1483
    %2112 = vmatprep.subr.bf16.mxu0 %v1480
    %2113 = vmatpush1.bf16.msra.mxu0 %v1479
    %2114 = vmatprep.subr.bf16.mxu0 %v1540
    %2115 = vmatpush2.bf16.msra.mxu0 %v1539
    %2116 = vmatprep.subr.bf16.mxu0 %v1536
    %2117 = vmatpush2.bf16.msra.mxu0 %v1535
    %2118 = vmatprep.subr.bf16.mxu0 %v1532
    %2119 = vmatpush2.bf16.msra.mxu0 %v1531
    %2120 = vmatprep.subr.bf16.mxu0 %v1528
    %2121 = vmatpush2.bf16.msra.mxu0 %v1527
    %2122 = vmatprep.subr.bf16.mxu0 %v1524
    %2123 = vmatpush2.bf16.msra.mxu0 %v1523
    %2124 = vmatprep.subr.bf16.mxu0 %v1520
    %2125 = vmatpush2.bf16.msra.mxu0 %v1519
    %2126 = vmatprep.subr.bf16.mxu0 %v1516
    %2127 = vmatpush2.bf16.msra.mxu0 %v1515
    %2128 = vmatprep.subr.bf16.mxu0 %v1512
    %2129 = vmatpush2.bf16.msra.mxu0 %v1511
    %2130 = vmatprep.mubr.bf16.mxu0 %v119
    %2131 = vmatmul.mubr.bf16.gmra.mxu0 %v118
    %v2132 = vpop.f32.mrf.mxu0
    %v2133 = vadd.f32 %v2090, %v2132
    %v2134 = vpop.f32.mrf.mxu0
    %v2135 = vadd.f32 %v2092, %v2134
    %v2136 = vpop.f32.mrf.mxu0
    %v2137 = vadd.f32 %v2094, %v2136
    %v2138 = vpop.f32.mrf.mxu0
    %v2139 = vadd.f32 %v2096, %v2138
    %2140 = vdwg.mxu0
    %v2141 = vld [vmem:[%s4] sm:$0xf]
    %v2143 = vlaneseq
    %v2144 = vshrl.u32 %v2143, 7
    %v2145 = vsub.s32 0, %v2144
    %v2146 = vrot.slane %v2141, %v2145
    %v2147 = vlaneseq
    %v2148 = vshrl.u32 %v2147, 7
    %v2149 = vsub.s32 1, %v2148
    %v2150 = vrot.slane %v2141, %v2149
    %v2151 = vlaneseq
    %v2152 = vshrl.u32 %v2151, 7
    %v2153 = vsub.s32 2, %v2152
    %v2154 = vrot.slane %v2141, %v2153
    %v2155 = vlaneseq
    %v2156 = vshrl.u32 %v2155, 7
    %v2157 = vsub.s32 3, %v2156
    %v2158 = vrot.slane %v2141, %v2157
    %v2163 = vadd.f32 %v1961, %v2146
    %v2164 = vadd.f32 %v1963, %v2150
    %v2165 = vadd.f32 %v2133, %v2154
    %v2166 = vadd.f32 %v2135, %v2158
    %v2167 = vadd.f32 %v1965, %v2146
    %v2168 = vadd.f32 %v1967, %v2150
    %v2169 = vadd.f32 %v2137, %v2154
    %v2170 = vadd.f32 %v2139, %v2158
    %v2171 = vmax.f32 %v2163, 0.0
    %v2172 = vmax.f32 %v2164, 0.0
    %v2173 = vmax.f32 %v2165, 0.0
    %v2174 = vmax.f32 %v2166, 0.0
    %v2175 = vmax.f32 %v2167, 0.0
    %v2176 = vmax.f32 %v2168, 0.0
    %v2177 = vmax.f32 %v2169, 0.0
    %v2178 = vmax.f32 %v2170, 0.0
    %v2179 = vpack.c.bf16 %v2175, %v2171
    %v2180 = vpack.c.bf16 %v2176, %v2172
    %v2181 = vpack.c.bf16 %v2177, %v2173
    %v2182 = vpack.c.bf16 %v2178, %v2174
    %v2183 = vld [vmem:[#allocation10] sm:$0xf]
    %v2184 = vld [vmem:[#allocation10 + $0x4] sm:$0xf]
    %v2185 = vld [vmem:[#allocation10 + $0x8] sm:$0xf]
    %v2186 = vld [vmem:[#allocation10 + $0xc] sm:$0xf]
    %v2187 = vld [vmem:[#allocation10 + $0x10] sm:$0xf]
    %v2188 = vld [vmem:[#allocation10 + $0x14] sm:$0xf]
    %v2189 = vld [vmem:[#allocation10 + $0x18] sm:$0xf]
    %v2190 = vld [vmem:[#allocation10 + $0x1c] sm:$0xf]
    %v2191 = vld [vmem:[#allocation10 + $0x20] sm:$0xf]
    %v2192 = vld [vmem:[#allocation10 + $0x24] sm:$0xf]
    %v2193 = vld [vmem:[#allocation10 + $0x28] sm:$0xf]
    %v2194 = vld [vmem:[#allocation10 + $0x2c] sm:$0xf]
    %v2195 = vld [vmem:[#allocation10 + $0x30] sm:$0xf]
    %v2196 = vld [vmem:[#allocation10 + $0x34] sm:$0xf]
    %v2197 = vld [vmem:[#allocation10 + $0x38] sm:$0xf]
    %v2198 = vld [vmem:[#allocation10 + $0x3c] sm:$0xf]
    %v2199 = vld [vmem:[#allocation10 + $0x40] sm:$0xf]
    %v2200 = vld [vmem:[#allocation10 + $0x44] sm:$0xf]
    %v2201 = vld [vmem:[#allocation10 + $0x48] sm:$0xf]
    %v2202 = vld [vmem:[#allocation10 + $0x4c] sm:$0xf]
    %v2203 = vld [vmem:[#allocation10 + $0x50] sm:$0xf]
    %v2204 = vld [vmem:[#allocation10 + $0x54] sm:$0xf]
    %v2205 = vld [vmem:[#allocation10 + $0x58] sm:$0xf]
    %v2206 = vld [vmem:[#allocation10 + $0x5c] sm:$0xf]
    %v2207 = vld [vmem:[#allocation10 + $0x60] sm:$0xf]
    %v2208 = vld [vmem:[#allocation10 + $0x64] sm:$0xf]
    %v2209 = vld [vmem:[#allocation10 + $0x68] sm:$0xf]
    %v2210 = vld [vmem:[#allocation10 + $0x6c] sm:$0xf]
    %v2211 = vld [vmem:[#allocation10 + $0x70] sm:$0xf]
    %v2212 = vld [vmem:[#allocation10 + $0x74] sm:$0xf]
    %v2213 = vld [vmem:[#allocation10 + $0x78] sm:$0xf]
    %v2214 = vld [vmem:[#allocation10 + $0x7c] sm:$0xf]
    %v2215 = vld [vmem:[#allocation10 + $0x80] sm:$0xf]
    %v2216 = vld [vmem:[#allocation10 + $0x84] sm:$0xf]
    %v2217 = vld [vmem:[#allocation10 + $0x88] sm:$0xf]
    %v2218 = vld [vmem:[#allocation10 + $0x8c] sm:$0xf]
    %v2219 = vld [vmem:[#allocation10 + $0x90] sm:$0xf]
    %v2220 = vld [vmem:[#allocation10 + $0x94] sm:$0xf]
    %v2221 = vld [vmem:[#allocation10 + $0x98] sm:$0xf]
    %v2222 = vld [vmem:[#allocation10 + $0x9c] sm:$0xf]
    %v2223 = vld [vmem:[#allocation10 + $0xa0] sm:$0xf]
    %v2224 = vld [vmem:[#allocation10 + $0xa4] sm:$0xf]
    %v2225 = vld [vmem:[#allocation10 + $0xa8] sm:$0xf]
    %v2226 = vld [vmem:[#allocation10 + $0xac] sm:$0xf]
    %v2227 = vld [vmem:[#allocation10 + $0xb0] sm:$0xf]
    %v2228 = vld [vmem:[#allocation10 + $0xb4] sm:$0xf]
    %v2229 = vld [vmem:[#allocation10 + $0xb8] sm:$0xf]
    %v2230 = vld [vmem:[#allocation10 + $0xbc] sm:$0xf]
    %v2231 = vld [vmem:[#allocation10 + $0xc0] sm:$0xf]
    %v2232 = vld [vmem:[#allocation10 + $0xc4] sm:$0xf]
    %v2233 = vld [vmem:[#allocation10 + $0xc8] sm:$0xf]
    %v2234 = vld [vmem:[#allocation10 + $0xcc] sm:$0xf]
    %v2235 = vld [vmem:[#allocation10 + $0xd0] sm:$0xf]
    %v2236 = vld [vmem:[#allocation10 + $0xd4] sm:$0xf]
    %v2237 = vld [vmem:[#allocation10 + $0xd8] sm:$0xf]
    %v2238 = vld [vmem:[#allocation10 + $0xdc] sm:$0xf]
    %v2239 = vld [vmem:[#allocation10 + $0xe0] sm:$0xf]
    %v2240 = vld [vmem:[#allocation10 + $0xe4] sm:$0xf]
    %v2241 = vld [vmem:[#allocation10 + $0xe8] sm:$0xf]
    %v2242 = vld [vmem:[#allocation10 + $0xec] sm:$0xf]
    %v2243 = vld [vmem:[#allocation10 + $0xf0] sm:$0xf]
    %v2244 = vld [vmem:[#allocation10 + $0xf4] sm:$0xf]
    %v2245 = vld [vmem:[#allocation10 + $0xf8] sm:$0xf]
    %v2246 = vld [vmem:[#allocation10 + $0xfc] sm:$0xf]
    %v2247 = vld [vmem:[%s6] sm:$0x1]
    %v2249 = vlaneseq
    %v2250 = vshrl.u32 %v2249, 7
    %v2251 = vsub.s32 0, %v2250
    %v2252 = vrot.slane %v2247, %v2251
    %v2318 = vunpack.c.l.b16 %v2183
    %v2319 = vunpack.c.l.b16 %v2184
    %v2320 = vunpack.c.l.b16 %v2185
    %v2321 = vunpack.c.l.b16 %v2186
    %v2322 = vunpack.c.l.b16 %v2187
    %v2323 = vunpack.c.l.b16 %v2188
    %v2324 = vunpack.c.l.b16 %v2189
    %v2325 = vunpack.c.l.b16 %v2190
    %v2326 = vunpack.c.l.b16 %v2191
    %v2327 = vunpack.c.l.b16 %v2192
    %v2328 = vunpack.c.l.b16 %v2193
    %v2329 = vunpack.c.l.b16 %v2194
    %v2330 = vunpack.c.l.b16 %v2195
    %v2331 = vunpack.c.l.b16 %v2196
    %v2332 = vunpack.c.l.b16 %v2197
    %v2333 = vunpack.c.l.b16 %v2198
    %v2334 = vunpack.c.l.b16 %v2199
    %v2335 = vunpack.c.l.b16 %v2200
    %v2336 = vunpack.c.l.b16 %v2201
    %v2337 = vunpack.c.l.b16 %v2202
    %v2338 = vunpack.c.l.b16 %v2203
    %v2339 = vunpack.c.l.b16 %v2204
    %v2340 = vunpack.c.l.b16 %v2205
    %v2341 = vunpack.c.l.b16 %v2206
    %v2342 = vunpack.c.l.b16 %v2207
    %v2343 = vunpack.c.l.b16 %v2208
    %v2344 = vunpack.c.l.b16 %v2209
    %v2345 = vunpack.c.l.b16 %v2210
    %v2346 = vunpack.c.l.b16 %v2211
    %v2347 = vunpack.c.l.b16 %v2212
    %v2348 = vunpack.c.l.b16 %v2213
    %v2349 = vunpack.c.l.b16 %v2214
    %v2350 = vunpack.c.l.b16 %v2215
    %v2351 = vunpack.c.l.b16 %v2216
    %v2352 = vunpack.c.l.b16 %v2217
    %v2353 = vunpack.c.l.b16 %v2218
    %v2354 = vunpack.c.l.b16 %v2219
    %v2355 = vunpack.c.l.b16 %v2220
    %v2356 = vunpack.c.l.b16 %v2221
    %v2357 = vunpack.c.l.b16 %v2222
    %v2358 = vunpack.c.l.b16 %v2223
    %v2359 = vunpack.c.l.b16 %v2224
    %v2360 = vunpack.c.l.b16 %v2225
    %v2361 = vunpack.c.l.b16 %v2226
    %v2362 = vunpack.c.l.b16 %v2227
    %v2363 = vunpack.c.l.b16 %v2228
    %v2364 = vunpack.c.l.b16 %v2229
    %v2365 = vunpack.c.l.b16 %v2230
    %v2366 = vunpack.c.l.b16 %v2231
    %v2367 = vunpack.c.l.b16 %v2232
    %v2368 = vunpack.c.l.b16 %v2233
    %v2369 = vunpack.c.l.b16 %v2234
    %v2370 = vunpack.c.l.b16 %v2235
    %v2371 = vunpack.c.l.b16 %v2236
    %v2372 = vunpack.c.l.b16 %v2237
    %v2373 = vunpack.c.l.b16 %v2238
    %v2374 = vunpack.c.l.b16 %v2239
    %v2375 = vunpack.c.l.b16 %v2240
    %v2376 = vunpack.c.l.b16 %v2241
    %v2377 = vunpack.c.l.b16 %v2242
    %v2378 = vunpack.c.l.b16 %v2243
    %v2379 = vunpack.c.l.b16 %v2244
    %v2380 = vunpack.c.l.b16 %v2245
    %v2381 = vunpack.c.l.b16 %v2246
    %v2382 = vpack.c.b16 %v2319, %v2318
    %v2383 = vpack.c.b16 %v2321, %v2320
    %v2384 = vpack.c.b16 %v2323, %v2322
    %v2385 = vpack.c.b16 %v2325, %v2324
    %v2386 = vpack.c.b16 %v2327, %v2326
    %v2387 = vpack.c.b16 %v2329, %v2328
    %v2388 = vpack.c.b16 %v2331, %v2330
    %v2389 = vpack.c.b16 %v2333, %v2332
    %v2390 = vpack.c.b16 %v2335, %v2334
    %v2391 = vpack.c.b16 %v2337, %v2336
    %v2392 = vpack.c.b16 %v2339, %v2338
    %v2393 = vpack.c.b16 %v2341, %v2340
    %v2394 = vpack.c.b16 %v2343, %v2342
    %v2395 = vpack.c.b16 %v2345, %v2344
    %v2396 = vpack.c.b16 %v2347, %v2346
    %v2397 = vpack.c.b16 %v2349, %v2348
    %v2398 = vpack.c.b16 %v2351, %v2350
    %v2399 = vpack.c.b16 %v2353, %v2352
    %v2400 = vpack.c.b16 %v2355, %v2354
    %v2401 = vpack.c.b16 %v2357, %v2356
    %v2402 = vpack.c.b16 %v2359, %v2358
    %v2403 = vpack.c.b16 %v2361, %v2360
    %v2404 = vpack.c.b16 %v2363, %v2362
    %v2405 = vpack.c.b16 %v2365, %v2364
    %v2406 = vpack.c.b16 %v2367, %v2366
    %v2407 = vpack.c.b16 %v2369, %v2368
    %v2408 = vpack.c.b16 %v2371, %v2370
    %v2409 = vpack.c.b16 %v2373, %v2372
    %v2410 = vpack.c.b16 %v2375, %v2374
    %v2411 = vpack.c.b16 %v2377, %v2376
    %v2412 = vpack.c.b16 %v2379, %v2378
    %v2413 = vpack.c.b16 %v2381, %v2380
    %2446 = vmatprep.subr.bf16.mxu0 0
    %2447 = vmatpush1.bf16.msra.mxu0 %v2389
    %2448 = vmatprep.subr.bf16.mxu0 0
    %2449 = vmatpush1.bf16.msra.mxu0 %v2388
    %2450 = vmatprep.subr.bf16.mxu0 0
    %2451 = vmatpush1.bf16.msra.mxu0 %v2387
    %2452 = vmatprep.subr.bf16.mxu0 0
    %2453 = vmatpush1.bf16.msra.mxu0 %v2386
    %2454 = vmatprep.subr.bf16.mxu0 0
    %2455 = vmatpush1.bf16.msra.mxu0 %v2385
    %2456 = vmatprep.subr.bf16.mxu0 0
    %2457 = vmatpush1.bf16.msra.mxu0 %v2384
    %2458 = vmatprep.subr.bf16.mxu0 0
    %2459 = vmatpush1.bf16.msra.mxu0 %v2383
    %2460 = vmatprep.subr.bf16.mxu0 0
    %2461 = vmatpush1.bf16.msra.mxu0 %v2382
    %2462 = vmatprep.subr.bf16.mxu0 0
    %2463 = vmatpush2.bf16.msra.mxu0 %v2397
    %2464 = vmatprep.subr.bf16.mxu0 0
    %2465 = vmatpush2.bf16.msra.mxu0 %v2396
    %2466 = vmatprep.subr.bf16.mxu0 0
    %2467 = vmatpush2.bf16.msra.mxu0 %v2395
    %2468 = vmatprep.subr.bf16.mxu0 0
    %2469 = vmatpush2.bf16.msra.mxu0 %v2394
    %2470 = vmatprep.subr.bf16.mxu0 0
    %2471 = vmatpush2.bf16.msra.mxu0 %v2393
    %2472 = vmatprep.subr.bf16.mxu0 0
    %2473 = vmatpush2.bf16.msra.mxu0 %v2392
    %2474 = vmatprep.subr.bf16.mxu0 0
    %2475 = vmatpush2.bf16.msra.mxu0 %v2391
    %2476 = vmatprep.subr.bf16.mxu0 0
    %2477 = vmatpush2.bf16.msra.mxu0 %v2390
    %2478 = vmatprep.mubr.bf16.mxu0 %v2180
    %2479 = vmatmul.mubr.bf16.gmra.mxu0 %v2179
    %v2480 = vpop.f32.mrf.mxu0
    %v2481 = vadd.f32 %v2252, %v2480
    %v2482 = vpop.f32.mrf.mxu0
    %v2483 = vpop.f32.mrf.mxu0
    %v2484 = vadd.f32 %v2252, %v2483
    %v2485 = vpop.f32.mrf.mxu0
    %2486 = vdwg.mxu0
    %2487 = vmatprep.subr.bf16.mxu0 0
    %2488 = vmatpush1.bf16.msra.mxu0 %v2405
    %2489 = vmatprep.subr.bf16.mxu0 0
    %2490 = vmatpush1.bf16.msra.mxu0 %v2404
    %2491 = vmatprep.subr.bf16.mxu0 0
    %2492 = vmatpush1.bf16.msra.mxu0 %v2403
    %2493 = vmatprep.subr.bf16.mxu0 0
    %2494 = vmatpush1.bf16.msra.mxu0 %v2402
    %2495 = vmatprep.subr.bf16.mxu0 0
    %2496 = vmatpush1.bf16.msra.mxu0 %v2401
    %2497 = vmatprep.subr.bf16.mxu0 0
    %2498 = vmatpush1.bf16.msra.mxu0 %v2400
    %2499 = vmatprep.subr.bf16.mxu0 0
    %2500 = vmatpush1.bf16.msra.mxu0 %v2399
    %2501 = vmatprep.subr.bf16.mxu0 0
    %2502 = vmatpush1.bf16.msra.mxu0 %v2398
    %2503 = vmatprep.subr.bf16.mxu0 0
    %2504 = vmatpush2.bf16.msra.mxu0 %v2413
    %2505 = vmatprep.subr.bf16.mxu0 0
    %2506 = vmatpush2.bf16.msra.mxu0 %v2412
    %2507 = vmatprep.subr.bf16.mxu0 0
    %2508 = vmatpush2.bf16.msra.mxu0 %v2411
    %2509 = vmatprep.subr.bf16.mxu0 0
    %2510 = vmatpush2.bf16.msra.mxu0 %v2410
    %2511 = vmatprep.subr.bf16.mxu0 0
    %2512 = vmatpush2.bf16.msra.mxu0 %v2409
    %2513 = vmatprep.subr.bf16.mxu0 0
    %2514 = vmatpush2.bf16.msra.mxu0 %v2408
    %2515 = vmatprep.subr.bf16.mxu0 0
    %2516 = vmatpush2.bf16.msra.mxu0 %v2407
    %2517 = vmatprep.subr.bf16.mxu0 0
    %2518 = vmatpush2.bf16.msra.mxu0 %v2406
    %2519 = vmatprep.mubr.bf16.mxu0 %v2182
    %2520 = vmatmul.mubr.bf16.gmra.mxu0 %v2181
    %v2521 = vpop.f32.mrf.mxu0
    %v2522 = vadd.f32 %v2481, %v2521
    %v2523 = vpop.f32.mrf.mxu0
    %v2524 = vpop.f32.mrf.mxu0
    %v2525 = vadd.f32 %v2484, %v2524
    %v2526 = vpop.f32.mrf.mxu0
    %2527 = vdwg.mxu0
    %v2528 = vpack.c.bf16 %v2525, %v2522
    %v2530 = vunpack.c.l.b16 %v2528
    %v2531 = vunpack.c.h.b16 %v2528
    %v2532 = vpack.c.b16 %v2530, %v2530
    %v2533 = vpack.c.b16 %v2531, %v2531
    %2536 = vst [vmem:[#allocation11] sm:$0xf] %v2532
    %2537 = vst [vmem:[#allocation11 + $0x4] sm:$0xf] %v2533
    // Predicated region
    $region50: #{tpu_custom_call.1} parent=1 // pred_check
      _
    $region51: #{tpu_custom_call.1} parent=1 // pred_check_branch
      %2539 = sbr.rel (0) target = $region53
    $region52: #{tpu_custom_call.1} parent=1 // pred_region
      %s2541 = ssub.s32 128, 128
      %2542 = vsyncadd [#allocation4], %s2541
      %s2543 = sshll.u32 [#allocation11], 4
      %s2544 = int_to_ptr.vmem [resolvable:$true] %s2543
      %2549 = dma.vmem_to_hbm [thread:$0]  %s2544, 128, %s7, [#allocation4], 64, 64, 4
    $region53: #{tpu_custom_call.1} parent=1 // pred_fallthru
      _
    // Predicated region
    $region54: #{tpu_custom_call.1} parent=1 // pred_check
      _
    $region55: #{tpu_custom_call.1} parent=1 // pred_check_branch
      %2551 = sbr.rel (0) target = $region57
    $region56: #{tpu_custom_call.1} parent=1 // pred_region
      %2552 = dma.done [#allocation4], 128
    $region57: #{tpu_custom_call.1} parent=1 // pred_fallthru
      _
    %2553 = vsyncpa [#allocation3], 1
    %2554 = vsyncpa [#allocation6], 1
    %2555 = vsyncpa [#allocation9], 1
    %2556 = vsyncpa [#allocation4], 1

</llo_original>
